<compile_context>
chip_gen: v7x
topology: tpu7x:2x2x1
jax: 0.10.0
libtpu: 0.0.40
codegen_flags: <defaults>
</compile_context>

<pallas_src>
import functools

import jax
import jax.numpy as jnp
from jax import lax
from jax.experimental import pallas as pl

EPS = 1e-8  # LayerNorm eps used by the module


def _layernorm(x, g, b):
    mu = jnp.mean(x, axis=-1, keepdims=True)
    var = jnp.mean((x - mu) ** 2, axis=-1, keepdims=True)
    return (x - mu) * lax.rsqrt(var + EPS) * g + b


# --------------------------------------------------------------------------
# Fused kernel: all transformer blocks (static loop) + head, single invocation
# --------------------------------------------------------------------------
def _leaprec_kernel(num_heads, beta,
                    x0_ref, m_ref, w_ref, sp_ref, bias_ref,
                    lng_ref, lnb_ref, pos_e_ref, neg_e_ref,
                    tri_ref, sgd_ref, pos_g_ref, neg_g_ref,
                    out_ref):
    P, H = x0_ref.shape                     # P = B * S
    nb = w_ref.shape[0]
    B, S, G = sgd_ref.shape
    hd = H // num_heads
    scale = 1.0 / (hd ** 0.5)

    x = x0_ref[...]                         # (P, H) f32 running activations
    m = m_ref[...]                          # (P, 1) timeline mask
    bias = bias_ref[...]                    # (P, P) additive: 0 allowed / -1e30 masked

    for blk in range(nb):                   # static loop; activations stay resident
        w = w_ref[blk]                      # (H, 6H) bf16 weight slab
        sp = sp_ref[blk]                    # (10, H) f32 small params
        ln1_g, ln1_b = sp[0:1], sp[1:2]
        bq, bk, bv, bo = sp[2:3], sp[3:4], sp[4:5], sp[5:6]
        ln2_g, ln2_b = sp[6:7], sp[7:8]
        b1, b2 = sp[8:9], sp[9:10]

        # attention layernorm -> Q input; K, V come from the un-normalized seqs
        q_in = _layernorm(x, ln1_g, ln1_b)
        q_b = q_in.astype(jnp.bfloat16)
        x_b = x.astype(jnp.bfloat16)

        # fused projections: one Q dot and one KV dot (bf16 MXU, f32 accumulate)
        q = jnp.dot(q_b, w[:, 0:H], preferred_element_type=jnp.float32) + bq
        kv = jnp.dot(x_b, w[:, H:3 * H], preferred_element_type=jnp.float32)
        k = kv[:, 0:H] + bk
        v = kv[:, H:2 * H] + bv
        wo = w[:, 3 * H:4 * H]              # (H, H) bf16

        mha = jnp.zeros((P, H), jnp.float32)
        for h in range(num_heads):          # static; heads sliced on the lane dim
            qh = q[:, h * hd:(h + 1) * hd]
            kh = k[:, h * hd:(h + 1) * hd]
            vh = v[:, h * hd:(h + 1) * hd]
            # 2D scores with precomputed causal + block-diagonal additive bias
            s = jnp.einsum('qd,kd->qk', qh, kh,
                           preferred_element_type=jnp.float32) * scale + bias
            s = s - jnp.max(s, axis=-1, keepdims=True)
            p = jnp.exp(s)
            p = p * pl.reciprocal(jnp.sum(p, axis=-1, keepdims=True), approx=True)
            oh = jnp.dot(p.astype(jnp.bfloat16), vh.astype(jnp.bfloat16),
                         preferred_element_type=jnp.float32)       # (P, hd)
            # fold this head through its Wo row-chunk (== concat @ Wo)
            mha = mha + jnp.dot(oh.astype(jnp.bfloat16),
                                wo[h * hd:(h + 1) * hd, :],
                                preferred_element_type=jnp.float32)
        mha = mha + bo

        seqs1 = q_in + mha                                   # residual uses LN'd Q
        h1 = _layernorm(seqs1, ln2_g, ln2_b)                 # forward layernorm
        # PointWiseFeedForward (Conv1d k=1 == per-position matmul) + residual
        ff = jnp.maximum(
            jnp.dot(h1.astype(jnp.bfloat16), w[:, 4 * H:5 * H],
                    preferred_element_type=jnp.float32) + b1, 0.0)
        ff = jnp.dot(ff.astype(jnp.bfloat16), w[:, 5 * H:6 * H],
                     preferred_element_type=jnp.float32) + b2
        x = (h1 + ff) * m                                    # timeline re-mask

    # ---- head: last LN, logits, decayed genre cumsum + KL calibration (f32) ----
    lf = _layernorm(x, lng_ref[...], lnb_ref[...])           # (P, H)
    pos_logits = jnp.sum(lf * pos_e_ref[...], axis=-1, keepdims=True)   # (P, 1)
    neg_logits = jnp.sum(lf * neg_e_ref[...], axis=-1, keepdims=True)

    # per-batch cumulative sum over S via the (S,S) lower-tri operator
    cum = jnp.einsum('bqk,bkg->bqg', tri_ref[...], sgd_ref[...],
                     preferred_element_type=jnp.float32)              # (B, S, G)
    cum = cum.reshape(P, G)
    denorm = jnp.sum(cum, axis=-1, keepdims=True)                     # (P, 1)
    # exact division (feeds log/KL); torch.nan_to_num(nan=1/G) <=> 0/0 rows -> 1/G
    safe = jnp.where(denorm > 0.0, denorm, 1.0)
    pgen = jnp.where(denorm > 0.0, cum / safe, 1.0 / G)
    coef = 1e-5
    pgen = (1.0 - coef) * pgen + coef * (1.0 / G)

    logp = jnp.log(pgen)
    pos_q = (1.0 - beta) * pos_g_ref[...] + beta * pgen
    neg_q = (1.0 - beta) * neg_g_ref[...] + beta * pgen
    pos_kl = jnp.sum(pgen * (logp - jnp.log(pos_q)), axis=-1, keepdims=True)
    neg_kl = jnp.sum(pgen * (logp - jnp.log(neg_q)), axis=-1, keepdims=True)

    out_ref[:, 0:1] = pos_logits
    out_ref[:, 1:2] = neg_logits
    out_ref[:, 2:3] = pos_logits - pos_kl
    out_ref[:, 3:4] = neg_logits - neg_kl


# --------------------------------------------------------------------------
# Full forward (glue: embedding gathers + slab packing + one pallas_call)
# --------------------------------------------------------------------------
def leaprec_forward(params, item_genre, decay, log_seqs, pos_seqs, neg_seqs,
                    *, num_heads, beta):
    item_emb = params['item_emb']
    H = item_emb.shape[1]
    B, S = log_seqs.shape
    G = item_genre.shape[1]
    P = B * S

    # log2feats prologue (emb_dropout is eval-mode identity)
    seqs0 = item_emb[log_seqs] * (float(H) ** 0.5) + params['pos_emb'][None, :S, :]
    tmask = (log_seqs != 0).astype(jnp.float32)[..., None]          # (B, S, 1)
    x0 = (seqs0 * tmask).reshape(P, H).astype(jnp.float32)
    m2 = tmask.reshape(P, 1)

    # weight slab (nb, H, 6H) bf16: [Wq | Wk | Wv | Wo | W1 | W2]
    w_slab = jnp.stack([
        jnp.concatenate([b['wq'], b['wk'], b['wv'], b['wo'], b['w1'], b['w2']],
                        axis=-1)
        for b in params['blocks']], axis=0).astype(jnp.bfloat16)
    # small-param slab (nb, 10, H) f32
    sp_slab = jnp.stack([
        jnp.concatenate([b['ln1_g'], b['ln1_b'], b['bq'], b['bk'], b['bv'],
                         b['bo'], b['ln2_g'], b['ln2_b'], b['b1'], b['b2']],
                        axis=0)
        for b in params['blocks']], axis=0).astype(jnp.float32)

    # combined causal + block-diagonal additive attention bias (P, P), const
    idx = jnp.arange(P)
    allowed = ((idx[:, None] // S == idx[None, :] // S)
               & (idx[None, :] % S <= idx[:, None] % S))
    attn_bias = jnp.where(allowed, 0.0, -1e30).astype(jnp.float32)

    # per-batch lower-triangular cumsum operator (B, S, S), const
    tri = jnp.tril(jnp.ones((S, S), jnp.float32))
    tri_b = jnp.tile(tri[None], (B, 1, 1))

    pos_e = item_emb[pos_seqs].reshape(P, H).astype(jnp.float32)
    neg_e = item_emb[neg_seqs].reshape(P, H).astype(jnp.float32)
    sgd = (item_genre[log_seqs] * decay[None, :, None]).astype(jnp.float32)  # (B,S,G)
    pos_g = item_genre[pos_seqs].reshape(P, G).astype(jnp.float32)
    neg_g = item_genre[neg_seqs].reshape(P, G).astype(jnp.float32)

    kernel = functools.partial(_leaprec_kernel, num_heads, float(beta))

    out = pl.pallas_call(
        kernel,
        out_shape=jax.ShapeDtypeStruct((P, 4), jnp.float32),
        # no grid / specs: single invocation, every operand fully VMEM-resident
    )(x0, m2, w_slab, sp_slab, attn_bias,
      params['ln_g'], params['ln_b'], pos_e, neg_e, tri_b, sgd, pos_g, neg_g)

    pos_logits = out[:, 0].reshape(B, S)
    neg_logits = out[:, 1].reshape(B, S)
    cal_pos = out[:, 2].reshape(B, S)
    cal_neg = out[:, 3].reshape(B, S)
    return pos_logits, neg_logits, cal_pos, cal_neg


# --------------------------------------------------------------------------
# Pure-JAX reference (same math, f32 everywhere; used for a sanity check)
# --------------------------------------------------------------------------
def reference_forward(params, item_genre, decay, log_seqs, pos_seqs, neg_seqs,
                      *, num_heads, beta):
    item_emb = params['item_emb']
    H = item_emb.shape[1]
    B, S = log_seqs.shape
    G = item_genre.shape[1]
    hd = H // num_heads

    seqs = item_emb[log_seqs] * (float(H) ** 0.5)
    seqs = seqs + params['pos_emb'][None, :S, :]
    tmask = (log_seqs != 0).astype(jnp.float32)[..., None]
    seqs = seqs * tmask
    causal = jnp.triu(jnp.ones((S, S), bool), k=1)

    for blk in params['blocks']:
        q_in = _layernorm(seqs, blk['ln1_g'], blk['ln1_b'])
        q = q_in @ blk['wq'] + blk['bq']
        k = seqs @ blk['wk'] + blk['bk']
        v = seqs @ blk['wv'] + blk['bv']
        qh = q.reshape(B, S, num_heads, hd).transpose(0, 2, 1, 3)
        kh = k.reshape(B, S, num_heads, hd).transpose(0, 2, 1, 3)
        vh = v.reshape(B, S, num_heads, hd).transpose(0, 2, 1, 3)
        s = jnp.einsum('bhqd,bhkd->bhqk', qh, kh) / (hd ** 0.5)
        s = jnp.where(causal[None, None], -1e30, s)
        p = jax.nn.softmax(s, axis=-1)
        attn = jnp.einsum('bhqk,bhkd->bhqd', p, vh).transpose(0, 2, 1, 3).reshape(B, S, H)
        mha = attn @ blk['wo'] + blk['bo']
        seqs = q_in + mha
        h1 = _layernorm(seqs, blk['ln2_g'], blk['ln2_b'])
        ff = jnp.maximum(h1 @ blk['w1'] + blk['b1'], 0.0) @ blk['w2'] + blk['b2']
        seqs = (h1 + ff) * tmask

    lf = _layernorm(seqs, params['ln_g'], params['ln_b'])
    pos_logits = (lf * item_emb[pos_seqs]).sum(-1)
    neg_logits = (lf * item_emb[neg_seqs]).sum(-1)

    sg = item_genre[log_seqs] * decay[None, :, None]
    cum = jnp.cumsum(sg, axis=1)
    denorm = cum.sum(2, keepdims=True)
    p_ = cum / denorm
    p_ = jnp.where(jnp.isnan(p_), 1.0 / G, p_)
    coef = 1e-5
    p_ = (1 - coef) * p_ + coef / G
    posq = (1 - beta) * item_genre[pos_seqs] + beta * p_
    negq = (1 - beta) * item_genre[neg_seqs] + beta * p_
    pos_kl = (p_ * jnp.log(p_ / posq)).sum(2)
    neg_kl = (p_ * jnp.log(p_ / negq)).sum(2)
    return pos_logits, neg_logits, pos_logits - pos_kl, neg_logits - neg_kl


# --------------------------------------------------------------------------
# Deterministic parameter init (shapes from the module's __init__)
# --------------------------------------------------------------------------
def init_params(key, num_items, hidden, max_len, num_blocks):
    keys = iter(jax.random.split(key, 4 + 16 * num_blocks))

    def nrm(shape, s):
        return (s * jax.random.normal(next(keys), shape)).astype(jnp.float32)

    def wmat(shape, s):
        # weight matrices are held at bf16-representable values: the kernel
        # DMAs weights in bf16, so the f32 reference sees identical values.
        return nrm(shape, s).astype(jnp.bfloat16).astype(jnp.float32)

    s = 1.0 / (hidden ** 0.5)
    params = {
        'item_emb': nrm((num_items + 1, hidden), 0.1).at[0].set(0.0),  # padding_idx=0
        'pos_emb': nrm((max_len, hidden), 0.1),
        'ln_g': jnp.ones((1, hidden), jnp.float32),
        'ln_b': jnp.zeros((1, hidden), jnp.float32),
        'blocks': [],
    }
    for _ in range(num_blocks):
        params['blocks'].append({
            'ln1_g': jnp.ones((1, hidden), jnp.float32),
            'ln1_b': jnp.zeros((1, hidden), jnp.float32),
            'wq': wmat((hidden, hidden), s), 'wk': wmat((hidden, hidden), s),
            'wv': wmat((hidden, hidden), s),
            'bq': nrm((1, hidden), 0.01), 'bk': nrm((1, hidden), 0.01),
            'bv': nrm((1, hidden), 0.01),
            'wo': wmat((hidden, hidden), s), 'bo': nrm((1, hidden), 0.01),
            'ln2_g': jnp.ones((1, hidden), jnp.float32),
            'ln2_b': jnp.zeros((1, hidden), jnp.float32),
            'w1': wmat((hidden, hidden), s), 'b1': nrm((1, hidden), 0.01),
            'w2': wmat((hidden, hidden), s), 'b2': nrm((1, hidden), 0.01),
        })
    return params


if __name__ == "__main__":
    # conf: hidden_dim=32, max_len=8, blocks=2, heads=2, dropout=0 (eval), beta=0.4
    B, S, H = 2, 8, 32
    NUM_HEADS, NUM_BLOCKS = 2, 2
    NUM_ITEMS, G = 20, 6
    BETA = 0.4

    key = jax.random.PRNGKey(0)
    kp, kg, ks, kpos, kneg = jax.random.split(key, 5)

    params = init_params(kp, NUM_ITEMS, H, S, NUM_BLOCKS)
    item_genre = jax.nn.softmax(jax.random.normal(kg, (NUM_ITEMS + 1, G)), axis=-1)
    item_genre = item_genre.at[0].set(0.0).astype(jnp.float32)   # padding item -> no genre
    decay = jnp.power(0.95, jnp.arange(S, 0, -1, dtype=jnp.float32))

    log_seqs = jax.random.randint(ks, (B, S), 1, NUM_ITEMS + 1, dtype=jnp.int32)
    prefix = jnp.array([[3], [1]], dtype=jnp.int32)              # left-padding with item 0
    log_seqs = jnp.where(jnp.arange(S)[None, :] < prefix, 0, log_seqs)
    pos_seqs = jax.random.randint(kpos, (B, S), 1, NUM_ITEMS + 1, dtype=jnp.int32)
    neg_seqs = jax.random.randint(kneg, (B, S), 1, NUM_ITEMS + 1, dtype=jnp.int32)

    outs = leaprec_forward(params, item_genre, decay, log_seqs, pos_seqs, neg_seqs,
                           num_heads=NUM_HEADS, beta=BETA)
    outs = jax.block_until_ready(outs)

    refs = reference_forward(params, item_genre, decay, log_seqs, pos_seqs, neg_seqs,
                             num_heads=NUM_HEADS, beta=BETA)
    for o, r in zip(outs, refs):
        assert o.shape == (B, S) and o.dtype == jnp.float32
        assert bool(jnp.all(jnp.isfinite(o)))
        assert bool(jnp.allclose(o, r, atol=5e-2, rtol=5e-2)), (o, r)

    print("KERNEL_OK")
</pallas_src>

<mosaic_0001>
module attributes {stable_mosaic.version = 11 : i64} {
  func.func @_leaprec_kernel(%arg0: memref<16x32xf32, #tpu.memory_space<vmem>>, %arg1: memref<16x1xf32, #tpu.memory_space<vmem>>, %arg2: memref<2x32x192xbf16, #tpu.memory_space<vmem>>, %arg3: memref<2x10x32xf32, #tpu.memory_space<vmem>>, %arg4: memref<16x16xf32, #tpu.memory_space<vmem>>, %arg5: memref<1x32xf32, #tpu.memory_space<vmem>>, %arg6: memref<1x32xf32, #tpu.memory_space<vmem>>, %arg7: memref<16x32xf32, #tpu.memory_space<vmem>>, %arg8: memref<16x32xf32, #tpu.memory_space<vmem>>, %arg9: memref<2x8x8xf32, #tpu.memory_space<vmem>>, %arg10: memref<2x8x6xf32, #tpu.memory_space<vmem>>, %arg11: memref<16x6xf32, #tpu.memory_space<vmem>>, %arg12: memref<16x6xf32, #tpu.memory_space<vmem>>, %arg13: memref<16x4xf32, #tpu.memory_space<vmem>>) attributes {dimension_semantics = [], scalar_prefetch = 0 : i64, scratch_operands = 0 : i64, tpu.core_type = #tpu.core_type<tc>} {
    %c0 = arith.constant 0 : index
    %c0_0 = arith.constant 0 : index
    %0 = vector.load %arg0[%c0, %c0_0] : memref<16x32xf32, #tpu.memory_space<vmem>>, vector<16x32xf32>
    %c0_1 = arith.constant 0 : index
    %c0_2 = arith.constant 0 : index
    %1 = vector.load %arg1[%c0_1, %c0_2] : memref<16x1xf32, #tpu.memory_space<vmem>>, vector<16x1xf32>
    %c0_3 = arith.constant 0 : index
    %c0_4 = arith.constant 0 : index
    %2 = vector.load %arg4[%c0_3, %c0_4] : memref<16x16xf32, #tpu.memory_space<vmem>>, vector<16x16xf32>
    %c0_5 = arith.constant 0 : index
    %c0_6 = arith.constant 0 : index
    %c0_7 = arith.constant 0 : index
    %3 = vector.load %arg2[%c0_5, %c0_6, %c0_7] : memref<2x32x192xbf16, #tpu.memory_space<vmem>>, vector<1x32x192xbf16>
    %4 = vector.shape_cast %3 : vector<1x32x192xbf16> to vector<32x192xbf16>
    %c0_8 = arith.constant 0 : index
    %c0_9 = arith.constant 0 : index
    %c0_10 = arith.constant 0 : index
    %5 = vector.load %arg3[%c0_8, %c0_9, %c0_10] : memref<2x10x32xf32, #tpu.memory_space<vmem>>, vector<1x10x32xf32>
    %6 = vector.shape_cast %5 : vector<1x10x32xf32> to vector<10x32xf32>
    %7 = vector.extract_strided_slice %6 {offsets = [0, 0], sizes = [1, 32], strides = [1, 1]} : vector<10x32xf32> to vector<1x32xf32>
    %8 = vector.extract_strided_slice %6 {offsets = [1, 0], sizes = [1, 32], strides = [1, 1]} : vector<10x32xf32> to vector<1x32xf32>
    %9 = vector.extract_strided_slice %6 {offsets = [2, 0], sizes = [1, 32], strides = [1, 1]} : vector<10x32xf32> to vector<1x32xf32>
    %10 = vector.extract_strided_slice %6 {offsets = [3, 0], sizes = [1, 32], strides = [1, 1]} : vector<10x32xf32> to vector<1x32xf32>
    %11 = vector.extract_strided_slice %6 {offsets = [4, 0], sizes = [1, 32], strides = [1, 1]} : vector<10x32xf32> to vector<1x32xf32>
    %12 = vector.extract_strided_slice %6 {offsets = [5, 0], sizes = [1, 32], strides = [1, 1]} : vector<10x32xf32> to vector<1x32xf32>
    %13 = vector.extract_strided_slice %6 {offsets = [6, 0], sizes = [1, 32], strides = [1, 1]} : vector<10x32xf32> to vector<1x32xf32>
    %14 = vector.extract_strided_slice %6 {offsets = [7, 0], sizes = [1, 32], strides = [1, 1]} : vector<10x32xf32> to vector<1x32xf32>
    %15 = vector.extract_strided_slice %6 {offsets = [8, 0], sizes = [1, 32], strides = [1, 1]} : vector<10x32xf32> to vector<1x32xf32>
    %16 = vector.extract_strided_slice %6 {offsets = [9, 0], sizes = [1, 32], strides = [1, 1]} : vector<10x32xf32> to vector<1x32xf32>
    %cst = arith.constant dense<0.000000e+00> : vector<16xf32>
    %17 = vector.multi_reduction <add>, %0, %cst [1] : vector<16x32xf32> to vector<16xf32>
    %18 = vector.shape_cast %17 : vector<16xf32> to vector<16x1xf32>
    %cst_11 = arith.constant 3.200000e+01 : f32
    %19 = vector.broadcast %cst_11 : f32 to vector<16x1xf32>
    %20 = arith.divf %18, %19 : vector<16x1xf32>
    %21 = vector.broadcast %20 : vector<16x1xf32> to vector<16x32xf32>
    %22 = arith.subf %0, %21 : vector<16x32xf32>
    %23 = arith.mulf %22, %22 : vector<16x32xf32>
    %cst_12 = arith.constant dense<0.000000e+00> : vector<16xf32>
    %24 = vector.multi_reduction <add>, %23, %cst_12 [1] : vector<16x32xf32> to vector<16xf32>
    %25 = vector.shape_cast %24 : vector<16xf32> to vector<16x1xf32>
    %cst_13 = arith.constant 3.200000e+01 : f32
    %26 = vector.broadcast %cst_13 : f32 to vector<16x1xf32>
    %27 = arith.divf %25, %26 : vector<16x1xf32>
    %28 = vector.broadcast %20 : vector<16x1xf32> to vector<16x32xf32>
    %29 = arith.subf %0, %28 : vector<16x32xf32>
    %cst_14 = arith.constant 9.99999993E-9 : f32
    %30 = vector.broadcast %cst_14 : f32 to vector<16x1xf32>
    %31 = arith.addf %27, %30 : vector<16x1xf32>
    %32 = math.rsqrt %31 : vector<16x1xf32>
    %33 = vector.broadcast %32 : vector<16x1xf32> to vector<16x32xf32>
    %34 = arith.mulf %29, %33 : vector<16x32xf32>
    %35 = vector.broadcast %7 : vector<1x32xf32> to vector<16x32xf32>
    %36 = arith.mulf %34, %35 : vector<16x32xf32>
    %37 = vector.broadcast %8 : vector<1x32xf32> to vector<16x32xf32>
    %38 = arith.addf %36, %37 : vector<16x32xf32>
    %39 = arith.truncf %38 : vector<16x32xf32> to vector<16x32xbf16>
    %40 = arith.truncf %0 : vector<16x32xf32> to vector<16x32xbf16>
    %41 = vector.extract_strided_slice %4 {offsets = [0, 0], sizes = [32, 32], strides = [1, 1]} : vector<32x192xbf16> to vector<32x32xbf16>
    %cst_15 = arith.constant dense<0.000000e+00> : vector<16x32xf32>
    %42 = tpu.matmul %39, %41, %cst_15 {dimension_numbers = #tpu.dot_dimension_numbers<[1], [0], [0], [1], [0, 0, 1, 1], [], []>} : vector<16x32xbf16>, vector<32x32xbf16>, vector<16x32xf32> -> vector<16x32xf32>
    %43 = vector.broadcast %9 : vector<1x32xf32> to vector<16x32xf32>
    %44 = arith.addf %42, %43 : vector<16x32xf32>
    %45 = vector.extract_strided_slice %4 {offsets = [0, 32], sizes = [32, 64], strides = [1, 1]} : vector<32x192xbf16> to vector<32x64xbf16>
    %cst_16 = arith.constant dense<0.000000e+00> : vector<16x64xf32>
    %46 = tpu.matmul %40, %45, %cst_16 {dimension_numbers = #tpu.dot_dimension_numbers<[1], [0], [0], [1], [0, 0, 1, 1], [], []>} : vector<16x32xbf16>, vector<32x64xbf16>, vector<16x64xf32> -> vector<16x64xf32>
    %47 = vector.extract_strided_slice %46 {offsets = [0, 0], sizes = [16, 32], strides = [1, 1]} : vector<16x64xf32> to vector<16x32xf32>
    %48 = vector.broadcast %10 : vector<1x32xf32> to vector<16x32xf32>
    %49 = arith.addf %47, %48 : vector<16x32xf32>
    %50 = vector.extract_strided_slice %46 {offsets = [0, 32], sizes = [16, 32], strides = [1, 1]} : vector<16x64xf32> to vector<16x32xf32>
    %51 = vector.broadcast %11 : vector<1x32xf32> to vector<16x32xf32>
    %52 = arith.addf %50, %51 : vector<16x32xf32>
    %53 = vector.extract_strided_slice %4 {offsets = [0, 96], sizes = [32, 32], strides = [1, 1]} : vector<32x192xbf16> to vector<32x32xbf16>
    %cst_17 = arith.constant 0.000000e+00 : f32
    %54 = vector.broadcast %cst_17 : f32 to vector<16x32xf32>
    %55 = vector.extract_strided_slice %44 {offsets = [0, 0], sizes = [16, 16], strides = [1, 1]} : vector<16x32xf32> to vector<16x16xf32>
    %56 = vector.extract_strided_slice %49 {offsets = [0, 0], sizes = [16, 16], strides = [1, 1]} : vector<16x32xf32> to vector<16x16xf32>
    %57 = vector.extract_strided_slice %52 {offsets = [0, 0], sizes = [16, 16], strides = [1, 1]} : vector<16x32xf32> to vector<16x16xf32>
    "tpu.trace_start"() <{level = 10 : i32, message = "qd,kd->qk"}> : () -> ()
    %cst_18 = arith.constant dense<0.000000e+00> : vector<16x16xf32>
    %58 = tpu.matmul %55, %56, %cst_18 {dimension_numbers = #tpu.dot_dimension_numbers<[1], [1], [0], [0], [0, 0, 1, 0], [], []>} : vector<16x16xf32>, vector<16x16xf32>, vector<16x16xf32> -> vector<16x16xf32>
    "tpu.trace_stop"() : () -> ()
    %cst_19 = arith.constant 2.500000e-01 : f32
    %59 = vector.broadcast %cst_19 : f32 to vector<16x16xf32>
    %60 = arith.mulf %58, %59 : vector<16x16xf32>
    %61 = arith.addf %60, %2 : vector<16x16xf32>
    %cst_20 = arith.constant dense<0xFF800000> : vector<16xf32>
    %62 = vector.multi_reduction <maximumf>, %61, %cst_20 [1] : vector<16x16xf32> to vector<16xf32>
    %63 = vector.shape_cast %62 : vector<16xf32> to vector<16x1xf32>
    %64 = vector.broadcast %63 : vector<16x1xf32> to vector<16x16xf32>
    %65 = arith.subf %61, %64 : vector<16x16xf32>
    %66 = math.exp %65 : vector<16x16xf32>
    %cst_21 = arith.constant dense<0.000000e+00> : vector<16xf32>
    %67 = vector.multi_reduction <add>, %66, %cst_21 [1] : vector<16x16xf32> to vector<16xf32>
    %68 = vector.shape_cast %67 : vector<16xf32> to vector<16x1xf32>
    %69 = tpu.reciprocal %68 {approx = true} : vector<16x1xf32> -> vector<16x1xf32>
    %70 = vector.broadcast %69 : vector<16x1xf32> to vector<16x16xf32>
    %71 = arith.mulf %66, %70 : vector<16x16xf32>
    %72 = arith.truncf %71 : vector<16x16xf32> to vector<16x16xbf16>
    %73 = arith.truncf %57 : vector<16x16xf32> to vector<16x16xbf16>
    %cst_22 = arith.constant dense<0.000000e+00> : vector<16x16xf32>
    %74 = tpu.matmul %72, %73, %cst_22 {dimension_numbers = #tpu.dot_dimension_numbers<[1], [0], [0], [1], [0, 0, 1, 1], [], []>} : vector<16x16xbf16>, vector<16x16xbf16>, vector<16x16xf32> -> vector<16x16xf32>
    %75 = arith.truncf %74 : vector<16x16xf32> to vector<16x16xbf16>
    %76 = vector.extract_strided_slice %53 {offsets = [0, 0], sizes = [16, 32], strides = [1, 1]} : vector<32x32xbf16> to vector<16x32xbf16>
    %cst_23 = arith.constant dense<0.000000e+00> : vector<16x32xf32>
    %77 = tpu.matmul %75, %76, %cst_23 {dimension_numbers = #tpu.dot_dimension_numbers<[1], [0], [0], [1], [0, 0, 1, 1], [], []>} : vector<16x16xbf16>, vector<16x32xbf16>, vector<16x32xf32> -> vector<16x32xf32>
    %78 = arith.addf %54, %77 : vector<16x32xf32>
    %79 = vector.extract_strided_slice %44 {offsets = [0, 16], sizes = [16, 16], strides = [1, 1]} : vector<16x32xf32> to vector<16x16xf32>
    %80 = vector.extract_strided_slice %49 {offsets = [0, 16], sizes = [16, 16], strides = [1, 1]} : vector<16x32xf32> to vector<16x16xf32>
    %81 = vector.extract_strided_slice %52 {offsets = [0, 16], sizes = [16, 16], strides = [1, 1]} : vector<16x32xf32> to vector<16x16xf32>
    "tpu.trace_start"() <{level = 10 : i32, message = "qd,kd->qk"}> : () -> ()
    %cst_24 = arith.constant dense<0.000000e+00> : vector<16x16xf32>
    %82 = tpu.matmul %79, %80, %cst_24 {dimension_numbers = #tpu.dot_dimension_numbers<[1], [1], [0], [0], [0, 0, 1, 0], [], []>} : vector<16x16xf32>, vector<16x16xf32>, vector<16x16xf32> -> vector<16x16xf32>
    "tpu.trace_stop"() : () -> ()
    %cst_25 = arith.constant 2.500000e-01 : f32
    %83 = vector.broadcast %cst_25 : f32 to vector<16x16xf32>
    %84 = arith.mulf %82, %83 : vector<16x16xf32>
    %85 = arith.addf %84, %2 : vector<16x16xf32>
    %cst_26 = arith.constant dense<0xFF800000> : vector<16xf32>
    %86 = vector.multi_reduction <maximumf>, %85, %cst_26 [1] : vector<16x16xf32> to vector<16xf32>
    %87 = vector.shape_cast %86 : vector<16xf32> to vector<16x1xf32>
    %88 = vector.broadcast %87 : vector<16x1xf32> to vector<16x16xf32>
    %89 = arith.subf %85, %88 : vector<16x16xf32>
    %90 = math.exp %89 : vector<16x16xf32>
    %cst_27 = arith.constant dense<0.000000e+00> : vector<16xf32>
    %91 = vector.multi_reduction <add>, %90, %cst_27 [1] : vector<16x16xf32> to vector<16xf32>
    %92 = vector.shape_cast %91 : vector<16xf32> to vector<16x1xf32>
    %93 = tpu.reciprocal %92 {approx = true} : vector<16x1xf32> -> vector<16x1xf32>
    %94 = vector.broadcast %93 : vector<16x1xf32> to vector<16x16xf32>
    %95 = arith.mulf %90, %94 : vector<16x16xf32>
    %96 = arith.truncf %95 : vector<16x16xf32> to vector<16x16xbf16>
    %97 = arith.truncf %81 : vector<16x16xf32> to vector<16x16xbf16>
    %cst_28 = arith.constant dense<0.000000e+00> : vector<16x16xf32>
    %98 = tpu.matmul %96, %97, %cst_28 {dimension_numbers = #tpu.dot_dimension_numbers<[1], [0], [0], [1], [0, 0, 1, 1], [], []>} : vector<16x16xbf16>, vector<16x16xbf16>, vector<16x16xf32> -> vector<16x16xf32>
    %99 = arith.truncf %98 : vector<16x16xf32> to vector<16x16xbf16>
    %100 = vector.extract_strided_slice %53 {offsets = [16, 0], sizes = [16, 32], strides = [1, 1]} : vector<32x32xbf16> to vector<16x32xbf16>
    %cst_29 = arith.constant dense<0.000000e+00> : vector<16x32xf32>
    %101 = tpu.matmul %99, %100, %cst_29 {dimension_numbers = #tpu.dot_dimension_numbers<[1], [0], [0], [1], [0, 0, 1, 1], [], []>} : vector<16x16xbf16>, vector<16x32xbf16>, vector<16x32xf32> -> vector<16x32xf32>
    %102 = arith.addf %78, %101 : vector<16x32xf32>
    %103 = vector.broadcast %12 : vector<1x32xf32> to vector<16x32xf32>
    %104 = arith.addf %102, %103 : vector<16x32xf32>
    %105 = arith.addf %38, %104 : vector<16x32xf32>
    %cst_30 = arith.constant dense<0.000000e+00> : vector<16xf32>
    %106 = vector.multi_reduction <add>, %105, %cst_30 [1] : vector<16x32xf32> to vector<16xf32>
    %107 = vector.shape_cast %106 : vector<16xf32> to vector<16x1xf32>
    %cst_31 = arith.constant 3.200000e+01 : f32
    %108 = vector.broadcast %cst_31 : f32 to vector<16x1xf32>
    %109 = arith.divf %107, %108 : vector<16x1xf32>
    %110 = vector.broadcast %109 : vector<16x1xf32> to vector<16x32xf32>
    %111 = arith.subf %105, %110 : vector<16x32xf32>
    %112 = arith.mulf %111, %111 : vector<16x32xf32>
    %cst_32 = arith.constant dense<0.000000e+00> : vector<16xf32>
    %113 = vector.multi_reduction <add>, %112, %cst_32 [1] : vector<16x32xf32> to vector<16xf32>
    %114 = vector.shape_cast %113 : vector<16xf32> to vector<16x1xf32>
    %cst_33 = arith.constant 3.200000e+01 : f32
    %115 = vector.broadcast %cst_33 : f32 to vector<16x1xf32>
    %116 = arith.divf %114, %115 : vector<16x1xf32>
    %117 = vector.broadcast %109 : vector<16x1xf32> to vector<16x32xf32>
    %118 = arith.subf %105, %117 : vector<16x32xf32>
    %cst_34 = arith.constant 9.99999993E-9 : f32
    %119 = vector.broadcast %cst_34 : f32 to vector<16x1xf32>
    %120 = arith.addf %116, %119 : vector<16x1xf32>
    %121 = math.rsqrt %120 : vector<16x1xf32>
    %122 = vector.broadcast %121 : vector<16x1xf32> to vector<16x32xf32>
    %123 = arith.mulf %118, %122 : vector<16x32xf32>
    %124 = vector.broadcast %13 : vector<1x32xf32> to vector<16x32xf32>
    %125 = arith.mulf %123, %124 : vector<16x32xf32>
    %126 = vector.broadcast %14 : vector<1x32xf32> to vector<16x32xf32>
    %127 = arith.addf %125, %126 : vector<16x32xf32>
    %128 = arith.truncf %127 : vector<16x32xf32> to vector<16x32xbf16>
    %129 = vector.extract_strided_slice %4 {offsets = [0, 128], sizes = [32, 32], strides = [1, 1]} : vector<32x192xbf16> to vector<32x32xbf16>
    %cst_35 = arith.constant dense<0.000000e+00> : vector<16x32xf32>
    %130 = tpu.matmul %128, %129, %cst_35 {dimension_numbers = #tpu.dot_dimension_numbers<[1], [0], [0], [1], [0, 0, 1, 1], [], []>} : vector<16x32xbf16>, vector<32x32xbf16>, vector<16x32xf32> -> vector<16x32xf32>
    %131 = vector.broadcast %15 : vector<1x32xf32> to vector<16x32xf32>
    %132 = arith.addf %130, %131 : vector<16x32xf32>
    %cst_36 = arith.constant 0.000000e+00 : f32
    %133 = vector.broadcast %cst_36 : f32 to vector<16x32xf32>
    %134 = arith.maximumf %132, %133 : vector<16x32xf32>
    %135 = arith.truncf %134 : vector<16x32xf32> to vector<16x32xbf16>
    %136 = vector.extract_strided_slice %4 {offsets = [0, 160], sizes = [32, 32], strides = [1, 1]} : vector<32x192xbf16> to vector<32x32xbf16>
    %cst_37 = arith.constant dense<0.000000e+00> : vector<16x32xf32>
    %137 = tpu.matmul %135, %136, %cst_37 {dimension_numbers = #tpu.dot_dimension_numbers<[1], [0], [0], [1], [0, 0, 1, 1], [], []>} : vector<16x32xbf16>, vector<32x32xbf16>, vector<16x32xf32> -> vector<16x32xf32>
    %138 = vector.broadcast %16 : vector<1x32xf32> to vector<16x32xf32>
    %139 = arith.addf %137, %138 : vector<16x32xf32>
    %140 = arith.addf %127, %139 : vector<16x32xf32>
    %141 = vector.broadcast %1 : vector<16x1xf32> to vector<16x32xf32>
    %142 = arith.mulf %140, %141 : vector<16x32xf32>
    %c1 = arith.constant 1 : index
    %c0_38 = arith.constant 0 : index
    %c0_39 = arith.constant 0 : index
    %143 = vector.load %arg2[%c1, %c0_38, %c0_39] : memref<2x32x192xbf16, #tpu.memory_space<vmem>>, vector<1x32x192xbf16>
    %144 = vector.shape_cast %143 : vector<1x32x192xbf16> to vector<32x192xbf16>
    %c1_40 = arith.constant 1 : index
    %c0_41 = arith.constant 0 : index
    %c0_42 = arith.constant 0 : index
    %145 = vector.load %arg3[%c1_40, %c0_41, %c0_42] : memref<2x10x32xf32, #tpu.memory_space<vmem>>, vector<1x10x32xf32>
    %146 = vector.shape_cast %145 : vector<1x10x32xf32> to vector<10x32xf32>
    %147 = vector.extract_strided_slice %146 {offsets = [0, 0], sizes = [1, 32], strides = [1, 1]} : vector<10x32xf32> to vector<1x32xf32>
    %148 = vector.extract_strided_slice %146 {offsets = [1, 0], sizes = [1, 32], strides = [1, 1]} : vector<10x32xf32> to vector<1x32xf32>
    %149 = vector.extract_strided_slice %146 {offsets = [2, 0], sizes = [1, 32], strides = [1, 1]} : vector<10x32xf32> to vector<1x32xf32>
    %150 = vector.extract_strided_slice %146 {offsets = [3, 0], sizes = [1, 32], strides = [1, 1]} : vector<10x32xf32> to vector<1x32xf32>
    %151 = vector.extract_strided_slice %146 {offsets = [4, 0], sizes = [1, 32], strides = [1, 1]} : vector<10x32xf32> to vector<1x32xf32>
    %152 = vector.extract_strided_slice %146 {offsets = [5, 0], sizes = [1, 32], strides = [1, 1]} : vector<10x32xf32> to vector<1x32xf32>
    %153 = vector.extract_strided_slice %146 {offsets = [6, 0], sizes = [1, 32], strides = [1, 1]} : vector<10x32xf32> to vector<1x32xf32>
    %154 = vector.extract_strided_slice %146 {offsets = [7, 0], sizes = [1, 32], strides = [1, 1]} : vector<10x32xf32> to vector<1x32xf32>
    %155 = vector.extract_strided_slice %146 {offsets = [8, 0], sizes = [1, 32], strides = [1, 1]} : vector<10x32xf32> to vector<1x32xf32>
    %156 = vector.extract_strided_slice %146 {offsets = [9, 0], sizes = [1, 32], strides = [1, 1]} : vector<10x32xf32> to vector<1x32xf32>
    %cst_43 = arith.constant dense<0.000000e+00> : vector<16xf32>
    %157 = vector.multi_reduction <add>, %142, %cst_43 [1] : vector<16x32xf32> to vector<16xf32>
    %158 = vector.shape_cast %157 : vector<16xf32> to vector<16x1xf32>
    %cst_44 = arith.constant 3.200000e+01 : f32
    %159 = vector.broadcast %cst_44 : f32 to vector<16x1xf32>
    %160 = arith.divf %158, %159 : vector<16x1xf32>
    %161 = vector.broadcast %160 : vector<16x1xf32> to vector<16x32xf32>
    %162 = arith.subf %142, %161 : vector<16x32xf32>
    %163 = arith.mulf %162, %162 : vector<16x32xf32>
    %cst_45 = arith.constant dense<0.000000e+00> : vector<16xf32>
    %164 = vector.multi_reduction <add>, %163, %cst_45 [1] : vector<16x32xf32> to vector<16xf32>
    %165 = vector.shape_cast %164 : vector<16xf32> to vector<16x1xf32>
    %cst_46 = arith.constant 3.200000e+01 : f32
    %166 = vector.broadcast %cst_46 : f32 to vector<16x1xf32>
    %167 = arith.divf %165, %166 : vector<16x1xf32>
    %168 = vector.broadcast %160 : vector<16x1xf32> to vector<16x32xf32>
    %169 = arith.subf %142, %168 : vector<16x32xf32>
    %cst_47 = arith.constant 9.99999993E-9 : f32
    %170 = vector.broadcast %cst_47 : f32 to vector<16x1xf32>
    %171 = arith.addf %167, %170 : vector<16x1xf32>
    %172 = math.rsqrt %171 : vector<16x1xf32>
    %173 = vector.broadcast %172 : vector<16x1xf32> to vector<16x32xf32>
    %174 = arith.mulf %169, %173 : vector<16x32xf32>
    %175 = vector.broadcast %147 : vector<1x32xf32> to vector<16x32xf32>
    %176 = arith.mulf %174, %175 : vector<16x32xf32>
    %177 = vector.broadcast %148 : vector<1x32xf32> to vector<16x32xf32>
    %178 = arith.addf %176, %177 : vector<16x32xf32>
    %179 = arith.truncf %178 : vector<16x32xf32> to vector<16x32xbf16>
    %180 = arith.truncf %142 : vector<16x32xf32> to vector<16x32xbf16>
    %181 = vector.extract_strided_slice %144 {offsets = [0, 0], sizes = [32, 32], strides = [1, 1]} : vector<32x192xbf16> to vector<32x32xbf16>
    %cst_48 = arith.constant dense<0.000000e+00> : vector<16x32xf32>
    %182 = tpu.matmul %179, %181, %cst_48 {dimension_numbers = #tpu.dot_dimension_numbers<[1], [0], [0], [1], [0, 0, 1, 1], [], []>} : vector<16x32xbf16>, vector<32x32xbf16>, vector<16x32xf32> -> vector<16x32xf32>
    %183 = vector.broadcast %149 : vector<1x32xf32> to vector<16x32xf32>
    %184 = arith.addf %182, %183 : vector<16x32xf32>
    %185 = vector.extract_strided_slice %144 {offsets = [0, 32], sizes = [32, 64], strides = [1, 1]} : vector<32x192xbf16> to vector<32x64xbf16>
    %cst_49 = arith.constant dense<0.000000e+00> : vector<16x64xf32>
    %186 = tpu.matmul %180, %185, %cst_49 {dimension_numbers = #tpu.dot_dimension_numbers<[1], [0], [0], [1], [0, 0, 1, 1], [], []>} : vector<16x32xbf16>, vector<32x64xbf16>, vector<16x64xf32> -> vector<16x64xf32>
    %187 = vector.extract_strided_slice %186 {offsets = [0, 0], sizes = [16, 32], strides = [1, 1]} : vector<16x64xf32> to vector<16x32xf32>
    %188 = vector.broadcast %150 : vector<1x32xf32> to vector<16x32xf32>
    %189 = arith.addf %187, %188 : vector<16x32xf32>
    %190 = vector.extract_strided_slice %186 {offsets = [0, 32], sizes = [16, 32], strides = [1, 1]} : vector<16x64xf32> to vector<16x32xf32>
    %191 = vector.broadcast %151 : vector<1x32xf32> to vector<16x32xf32>
    %192 = arith.addf %190, %191 : vector<16x32xf32>
    %193 = vector.extract_strided_slice %144 {offsets = [0, 96], sizes = [32, 32], strides = [1, 1]} : vector<32x192xbf16> to vector<32x32xbf16>
    %cst_50 = arith.constant 0.000000e+00 : f32
    %194 = vector.broadcast %cst_50 : f32 to vector<16x32xf32>
    %195 = vector.extract_strided_slice %184 {offsets = [0, 0], sizes = [16, 16], strides = [1, 1]} : vector<16x32xf32> to vector<16x16xf32>
    %196 = vector.extract_strided_slice %189 {offsets = [0, 0], sizes = [16, 16], strides = [1, 1]} : vector<16x32xf32> to vector<16x16xf32>
    %197 = vector.extract_strided_slice %192 {offsets = [0, 0], sizes = [16, 16], strides = [1, 1]} : vector<16x32xf32> to vector<16x16xf32>
    "tpu.trace_start"() <{level = 10 : i32, message = "qd,kd->qk"}> : () -> ()
    %cst_51 = arith.constant dense<0.000000e+00> : vector<16x16xf32>
    %198 = tpu.matmul %195, %196, %cst_51 {dimension_numbers = #tpu.dot_dimension_numbers<[1], [1], [0], [0], [0, 0, 1, 0], [], []>} : vector<16x16xf32>, vector<16x16xf32>, vector<16x16xf32> -> vector<16x16xf32>
    "tpu.trace_stop"() : () -> ()
    %cst_52 = arith.constant 2.500000e-01 : f32
    %199 = vector.broadcast %cst_52 : f32 to vector<16x16xf32>
    %200 = arith.mulf %198, %199 : vector<16x16xf32>
    %201 = arith.addf %200, %2 : vector<16x16xf32>
    %cst_53 = arith.constant dense<0xFF800000> : vector<16xf32>
    %202 = vector.multi_reduction <maximumf>, %201, %cst_53 [1] : vector<16x16xf32> to vector<16xf32>
    %203 = vector.shape_cast %202 : vector<16xf32> to vector<16x1xf32>
    %204 = vector.broadcast %203 : vector<16x1xf32> to vector<16x16xf32>
    %205 = arith.subf %201, %204 : vector<16x16xf32>
    %206 = math.exp %205 : vector<16x16xf32>
    %cst_54 = arith.constant dense<0.000000e+00> : vector<16xf32>
    %207 = vector.multi_reduction <add>, %206, %cst_54 [1] : vector<16x16xf32> to vector<16xf32>
    %208 = vector.shape_cast %207 : vector<16xf32> to vector<16x1xf32>
    %209 = tpu.reciprocal %208 {approx = true} : vector<16x1xf32> -> vector<16x1xf32>
    %210 = vector.broadcast %209 : vector<16x1xf32> to vector<16x16xf32>
    %211 = arith.mulf %206, %210 : vector<16x16xf32>
    %212 = arith.truncf %211 : vector<16x16xf32> to vector<16x16xbf16>
    %213 = arith.truncf %197 : vector<16x16xf32> to vector<16x16xbf16>
    %cst_55 = arith.constant dense<0.000000e+00> : vector<16x16xf32>
    %214 = tpu.matmul %212, %213, %cst_55 {dimension_numbers = #tpu.dot_dimension_numbers<[1], [0], [0], [1], [0, 0, 1, 1], [], []>} : vector<16x16xbf16>, vector<16x16xbf16>, vector<16x16xf32> -> vector<16x16xf32>
    %215 = arith.truncf %214 : vector<16x16xf32> to vector<16x16xbf16>
    %216 = vector.extract_strided_slice %193 {offsets = [0, 0], sizes = [16, 32], strides = [1, 1]} : vector<32x32xbf16> to vector<16x32xbf16>
    %cst_56 = arith.constant dense<0.000000e+00> : vector<16x32xf32>
    %217 = tpu.matmul %215, %216, %cst_56 {dimension_numbers = #tpu.dot_dimension_numbers<[1], [0], [0], [1], [0, 0, 1, 1], [], []>} : vector<16x16xbf16>, vector<16x32xbf16>, vector<16x32xf32> -> vector<16x32xf32>
    %218 = arith.addf %194, %217 : vector<16x32xf32>
    %219 = vector.extract_strided_slice %184 {offsets = [0, 16], sizes = [16, 16], strides = [1, 1]} : vector<16x32xf32> to vector<16x16xf32>
    %220 = vector.extract_strided_slice %189 {offsets = [0, 16], sizes = [16, 16], strides = [1, 1]} : vector<16x32xf32> to vector<16x16xf32>
    %221 = vector.extract_strided_slice %192 {offsets = [0, 16], sizes = [16, 16], strides = [1, 1]} : vector<16x32xf32> to vector<16x16xf32>
    "tpu.trace_start"() <{level = 10 : i32, message = "qd,kd->qk"}> : () -> ()
    %cst_57 = arith.constant dense<0.000000e+00> : vector<16x16xf32>
    %222 = tpu.matmul %219, %220, %cst_57 {dimension_numbers = #tpu.dot_dimension_numbers<[1], [1], [0], [0], [0, 0, 1, 0], [], []>} : vector<16x16xf32>, vector<16x16xf32>, vector<16x16xf32> -> vector<16x16xf32>
    "tpu.trace_stop"() : () -> ()
    %cst_58 = arith.constant 2.500000e-01 : f32
    %223 = vector.broadcast %cst_58 : f32 to vector<16x16xf32>
    %224 = arith.mulf %222, %223 : vector<16x16xf32>
    %225 = arith.addf %224, %2 : vector<16x16xf32>
    %cst_59 = arith.constant dense<0xFF800000> : vector<16xf32>
    %226 = vector.multi_reduction <maximumf>, %225, %cst_59 [1] : vector<16x16xf32> to vector<16xf32>
    %227 = vector.shape_cast %226 : vector<16xf32> to vector<16x1xf32>
    %228 = vector.broadcast %227 : vector<16x1xf32> to vector<16x16xf32>
    %229 = arith.subf %225, %228 : vector<16x16xf32>
    %230 = math.exp %229 : vector<16x16xf32>
    %cst_60 = arith.constant dense<0.000000e+00> : vector<16xf32>
    %231 = vector.multi_reduction <add>, %230, %cst_60 [1] : vector<16x16xf32> to vector<16xf32>
    %232 = vector.shape_cast %231 : vector<16xf32> to vector<16x1xf32>
    %233 = tpu.reciprocal %232 {approx = true} : vector<16x1xf32> -> vector<16x1xf32>
    %234 = vector.broadcast %233 : vector<16x1xf32> to vector<16x16xf32>
    %235 = arith.mulf %230, %234 : vector<16x16xf32>
    %236 = arith.truncf %235 : vector<16x16xf32> to vector<16x16xbf16>
    %237 = arith.truncf %221 : vector<16x16xf32> to vector<16x16xbf16>
    %cst_61 = arith.constant dense<0.000000e+00> : vector<16x16xf32>
    %238 = tpu.matmul %236, %237, %cst_61 {dimension_numbers = #tpu.dot_dimension_numbers<[1], [0], [0], [1], [0, 0, 1, 1], [], []>} : vector<16x16xbf16>, vector<16x16xbf16>, vector<16x16xf32> -> vector<16x16xf32>
    %239 = arith.truncf %238 : vector<16x16xf32> to vector<16x16xbf16>
    %240 = vector.extract_strided_slice %193 {offsets = [16, 0], sizes = [16, 32], strides = [1, 1]} : vector<32x32xbf16> to vector<16x32xbf16>
    %cst_62 = arith.constant dense<0.000000e+00> : vector<16x32xf32>
    %241 = tpu.matmul %239, %240, %cst_62 {dimension_numbers = #tpu.dot_dimension_numbers<[1], [0], [0], [1], [0, 0, 1, 1], [], []>} : vector<16x16xbf16>, vector<16x32xbf16>, vector<16x32xf32> -> vector<16x32xf32>
    %242 = arith.addf %218, %241 : vector<16x32xf32>
    %243 = vector.broadcast %152 : vector<1x32xf32> to vector<16x32xf32>
    %244 = arith.addf %242, %243 : vector<16x32xf32>
    %245 = arith.addf %178, %244 : vector<16x32xf32>
    %cst_63 = arith.constant dense<0.000000e+00> : vector<16xf32>
    %246 = vector.multi_reduction <add>, %245, %cst_63 [1] : vector<16x32xf32> to vector<16xf32>
    %247 = vector.shape_cast %246 : vector<16xf32> to vector<16x1xf32>
    %cst_64 = arith.constant 3.200000e+01 : f32
    %248 = vector.broadcast %cst_64 : f32 to vector<16x1xf32>
    %249 = arith.divf %247, %248 : vector<16x1xf32>
    %250 = vector.broadcast %249 : vector<16x1xf32> to vector<16x32xf32>
    %251 = arith.subf %245, %250 : vector<16x32xf32>
    %252 = arith.mulf %251, %251 : vector<16x32xf32>
    %cst_65 = arith.constant dense<0.000000e+00> : vector<16xf32>
    %253 = vector.multi_reduction <add>, %252, %cst_65 [1] : vector<16x32xf32> to vector<16xf32>
    %254 = vector.shape_cast %253 : vector<16xf32> to vector<16x1xf32>
    %cst_66 = arith.constant 3.200000e+01 : f32
    %255 = vector.broadcast %cst_66 : f32 to vector<16x1xf32>
    %256 = arith.divf %254, %255 : vector<16x1xf32>
    %257 = vector.broadcast %249 : vector<16x1xf32> to vector<16x32xf32>
    %258 = arith.subf %245, %257 : vector<16x32xf32>
    %cst_67 = arith.constant 9.99999993E-9 : f32
    %259 = vector.broadcast %cst_67 : f32 to vector<16x1xf32>
    %260 = arith.addf %256, %259 : vector<16x1xf32>
    %261 = math.rsqrt %260 : vector<16x1xf32>
    %262 = vector.broadcast %261 : vector<16x1xf32> to vector<16x32xf32>
    %263 = arith.mulf %258, %262 : vector<16x32xf32>
    %264 = vector.broadcast %153 : vector<1x32xf32> to vector<16x32xf32>
    %265 = arith.mulf %263, %264 : vector<16x32xf32>
    %266 = vector.broadcast %154 : vector<1x32xf32> to vector<16x32xf32>
    %267 = arith.addf %265, %266 : vector<16x32xf32>
    %268 = arith.truncf %267 : vector<16x32xf32> to vector<16x32xbf16>
    %269 = vector.extract_strided_slice %144 {offsets = [0, 128], sizes = [32, 32], strides = [1, 1]} : vector<32x192xbf16> to vector<32x32xbf16>
    %cst_68 = arith.constant dense<0.000000e+00> : vector<16x32xf32>
    %270 = tpu.matmul %268, %269, %cst_68 {dimension_numbers = #tpu.dot_dimension_numbers<[1], [0], [0], [1], [0, 0, 1, 1], [], []>} : vector<16x32xbf16>, vector<32x32xbf16>, vector<16x32xf32> -> vector<16x32xf32>
    %271 = vector.broadcast %155 : vector<1x32xf32> to vector<16x32xf32>
    %272 = arith.addf %270, %271 : vector<16x32xf32>
    %cst_69 = arith.constant 0.000000e+00 : f32
    %273 = vector.broadcast %cst_69 : f32 to vector<16x32xf32>
    %274 = arith.maximumf %272, %273 : vector<16x32xf32>
    %275 = arith.truncf %274 : vector<16x32xf32> to vector<16x32xbf16>
    %276 = vector.extract_strided_slice %144 {offsets = [0, 160], sizes = [32, 32], strides = [1, 1]} : vector<32x192xbf16> to vector<32x32xbf16>
    %cst_70 = arith.constant dense<0.000000e+00> : vector<16x32xf32>
    %277 = tpu.matmul %275, %276, %cst_70 {dimension_numbers = #tpu.dot_dimension_numbers<[1], [0], [0], [1], [0, 0, 1, 1], [], []>} : vector<16x32xbf16>, vector<32x32xbf16>, vector<16x32xf32> -> vector<16x32xf32>
    %278 = vector.broadcast %156 : vector<1x32xf32> to vector<16x32xf32>
    %279 = arith.addf %277, %278 : vector<16x32xf32>
    %280 = arith.addf %267, %279 : vector<16x32xf32>
    %281 = vector.broadcast %1 : vector<16x1xf32> to vector<16x32xf32>
    %282 = arith.mulf %280, %281 : vector<16x32xf32>
    %c0_71 = arith.constant 0 : index
    %c0_72 = arith.constant 0 : index
    %283 = vector.load %arg5[%c0_71, %c0_72] : memref<1x32xf32, #tpu.memory_space<vmem>>, vector<1x32xf32>
    %c0_73 = arith.constant 0 : index
    %c0_74 = arith.constant 0 : index
    %284 = vector.load %arg6[%c0_73, %c0_74] : memref<1x32xf32, #tpu.memory_space<vmem>>, vector<1x32xf32>
    %cst_75 = arith.constant dense<0.000000e+00> : vector<16xf32>
    %285 = vector.multi_reduction <add>, %282, %cst_75 [1] : vector<16x32xf32> to vector<16xf32>
    %286 = vector.shape_cast %285 : vector<16xf32> to vector<16x1xf32>
    %cst_76 = arith.constant 3.200000e+01 : f32
    %287 = vector.broadcast %cst_76 : f32 to vector<16x1xf32>
    %288 = arith.divf %286, %287 : vector<16x1xf32>
    %289 = vector.broadcast %288 : vector<16x1xf32> to vector<16x32xf32>
    %290 = arith.subf %282, %289 : vector<16x32xf32>
    %291 = arith.mulf %290, %290 : vector<16x32xf32>
    %cst_77 = arith.constant dense<0.000000e+00> : vector<16xf32>
    %292 = vector.multi_reduction <add>, %291, %cst_77 [1] : vector<16x32xf32> to vector<16xf32>
    %293 = vector.shape_cast %292 : vector<16xf32> to vector<16x1xf32>
    %cst_78 = arith.constant 3.200000e+01 : f32
    %294 = vector.broadcast %cst_78 : f32 to vector<16x1xf32>
    %295 = arith.divf %293, %294 : vector<16x1xf32>
    %296 = vector.broadcast %288 : vector<16x1xf32> to vector<16x32xf32>
    %297 = arith.subf %282, %296 : vector<16x32xf32>
    %cst_79 = arith.constant 9.99999993E-9 : f32
    %298 = vector.broadcast %cst_79 : f32 to vector<16x1xf32>
    %299 = arith.addf %295, %298 : vector<16x1xf32>
    %300 = math.rsqrt %299 : vector<16x1xf32>
    %301 = vector.broadcast %300 : vector<16x1xf32> to vector<16x32xf32>
    %302 = arith.mulf %297, %301 : vector<16x32xf32>
    %303 = vector.broadcast %283 : vector<1x32xf32> to vector<16x32xf32>
    %304 = arith.mulf %302, %303 : vector<16x32xf32>
    %305 = vector.broadcast %284 : vector<1x32xf32> to vector<16x32xf32>
    %306 = arith.addf %304, %305 : vector<16x32xf32>
    %c0_80 = arith.constant 0 : index
    %c0_81 = arith.constant 0 : index
    %307 = vector.load %arg7[%c0_80, %c0_81] : memref<16x32xf32, #tpu.memory_space<vmem>>, vector<16x32xf32>
    %308 = arith.mulf %306, %307 : vector<16x32xf32>
    %cst_82 = arith.constant dense<0.000000e+00> : vector<16xf32>
    %309 = vector.multi_reduction <add>, %308, %cst_82 [1] : vector<16x32xf32> to vector<16xf32>
    %310 = vector.shape_cast %309 : vector<16xf32> to vector<16x1xf32>
    %c0_83 = arith.constant 0 : index
    %c0_84 = arith.constant 0 : index
    %311 = vector.load %arg8[%c0_83, %c0_84] : memref<16x32xf32, #tpu.memory_space<vmem>>, vector<16x32xf32>
    %312 = arith.mulf %306, %311 : vector<16x32xf32>
    %cst_85 = arith.constant dense<0.000000e+00> : vector<16xf32>
    %313 = vector.multi_reduction <add>, %312, %cst_85 [1] : vector<16x32xf32> to vector<16xf32>
    %314 = vector.shape_cast %313 : vector<16xf32> to vector<16x1xf32>
    %c0_86 = arith.constant 0 : index
    %c0_87 = arith.constant 0 : index
    %c0_88 = arith.constant 0 : index
    %315 = vector.load %arg9[%c0_86, %c0_87, %c0_88] : memref<2x8x8xf32, #tpu.memory_space<vmem>>, vector<2x8x8xf32>
    %c0_89 = arith.constant 0 : index
    %c0_90 = arith.constant 0 : index
    %c0_91 = arith.constant 0 : index
    %316 = vector.load %arg10[%c0_89, %c0_90, %c0_91] : memref<2x8x6xf32, #tpu.memory_space<vmem>>, vector<2x8x6xf32>
    "tpu.trace_start"() <{level = 10 : i32, message = "bqk,bkg->bqg"}> : () -> ()
    %cst_92 = arith.constant dense<0.000000e+00> : vector<2x8x6xf32>
    %317 = tpu.matmul %315, %316, %cst_92 {dimension_numbers = #tpu.dot_dimension_numbers<[2], [1], [1], [2], [0, 0, 0, 1, 1, 2], [0], [0]>} : vector<2x8x8xf32>, vector<2x8x6xf32>, vector<2x8x6xf32> -> vector<2x8x6xf32>
    "tpu.trace_stop"() : () -> ()
    %318 = vector.shape_cast %317 : vector<2x8x6xf32> to vector<16x6xf32>
    %cst_93 = arith.constant dense<0.000000e+00> : vector<16xf32>
    %319 = vector.multi_reduction <add>, %318, %cst_93 [1] : vector<16x6xf32> to vector<16xf32>
    %320 = vector.shape_cast %319 : vector<16xf32> to vector<16x1xf32>
    %cst_94 = arith.constant 0.000000e+00 : f32
    %321 = vector.broadcast %cst_94 : f32 to vector<16x1xf32>
    %322 = arith.cmpf ogt, %320, %321 : vector<16x1xf32>
    %cst_95 = arith.constant 1.000000e+00 : f32
    %323 = vector.broadcast %cst_95 : f32 to vector<16x1xf32>
    %324 = arith.select %322, %320, %323 : vector<16x1xi1>, vector<16x1xf32>
    %cst_96 = arith.constant 0.000000e+00 : f32
    %325 = vector.broadcast %cst_96 : f32 to vector<16x1xf32>
    %326 = arith.cmpf ogt, %320, %325 : vector<16x1xf32>
    %327 = vector.broadcast %324 : vector<16x1xf32> to vector<16x6xf32>
    %328 = arith.divf %318, %327 : vector<16x6xf32>
    %cst_97 = arith.constant 0.166666672 : f32
    %329 = vector.shape_cast %326 : vector<16x1xi1> to vector<16x1xi1>
    %330 = vector.broadcast %329 : vector<16x1xi1> to vector<16x6xi1>
    %331 = vector.broadcast %cst_97 : f32 to vector<16x6xf32>
    %332 = arith.select %330, %328, %331 : vector<16x6xi1>, vector<16x6xf32>
    %cst_98 = arith.constant 0.999989986 : f32
    %333 = vector.broadcast %cst_98 : f32 to vector<16x6xf32>
    %334 = arith.mulf %333, %332 : vector<16x6xf32>
    %cst_99 = arith.constant 1.66666666E-6 : f32
    %335 = vector.broadcast %cst_99 : f32 to vector<16x6xf32>
    %336 = arith.addf %334, %335 : vector<16x6xf32>
    %337 = math.log %336 : vector<16x6xf32>
    %c0_100 = arith.constant 0 : index
    %c0_101 = arith.constant 0 : index
    %338 = vector.load %arg11[%c0_100, %c0_101] : memref<16x6xf32, #tpu.memory_space<vmem>>, vector<16x6xf32>
    %cst_102 = arith.constant 6.000000e-01 : f32
    %339 = vector.broadcast %cst_102 : f32 to vector<16x6xf32>
    %340 = arith.mulf %339, %338 : vector<16x6xf32>
    %cst_103 = arith.constant 4.000000e-01 : f32
    %341 = vector.broadcast %cst_103 : f32 to vector<16x6xf32>
    %342 = arith.mulf %341, %336 : vector<16x6xf32>
    %343 = arith.addf %340, %342 : vector<16x6xf32>
    %c0_104 = arith.constant 0 : index
    %c0_105 = arith.constant 0 : index
    %344 = vector.load %arg12[%c0_104, %c0_105] : memref<16x6xf32, #tpu.memory_space<vmem>>, vector<16x6xf32>
    %cst_106 = arith.constant 6.000000e-01 : f32
    %345 = vector.broadcast %cst_106 : f32 to vector<16x6xf32>
    %346 = arith.mulf %345, %344 : vector<16x6xf32>
    %cst_107 = arith.constant 4.000000e-01 : f32
    %347 = vector.broadcast %cst_107 : f32 to vector<16x6xf32>
    %348 = arith.mulf %347, %336 : vector<16x6xf32>
    %349 = arith.addf %346, %348 : vector<16x6xf32>
    %350 = math.log %343 : vector<16x6xf32>
    %351 = arith.subf %337, %350 : vector<16x6xf32>
    %352 = arith.mulf %336, %351 : vector<16x6xf32>
    %cst_108 = arith.constant dense<0.000000e+00> : vector<16xf32>
    %353 = vector.multi_reduction <add>, %352, %cst_108 [1] : vector<16x6xf32> to vector<16xf32>
    %354 = vector.shape_cast %353 : vector<16xf32> to vector<16x1xf32>
    %355 = math.log %349 : vector<16x6xf32>
    %356 = arith.subf %337, %355 : vector<16x6xf32>
    %357 = arith.mulf %336, %356 : vector<16x6xf32>
    %cst_109 = arith.constant dense<0.000000e+00> : vector<16xf32>
    %358 = vector.multi_reduction <add>, %357, %cst_109 [1] : vector<16x6xf32> to vector<16xf32>
    %359 = vector.shape_cast %358 : vector<16xf32> to vector<16x1xf32>
    %c0_110 = arith.constant 0 : index
    %c0_111 = arith.constant 0 : index
    %360 = vector.load %arg13[%c0_110, %c0_111] : memref<16x4xf32, #tpu.memory_space<vmem>>, vector<16x1xf32>
    tpu.vector_store %arg13[%c0_110, %c0_111], %310 {strides = array<i32>} : memref<16x4xf32, #tpu.memory_space<vmem>>, vector<16x1xf32>,
    %c0_112 = arith.constant 0 : index
    %c1_113 = arith.constant 1 : index
    %361 = vector.load %arg13[%c0_112, %c1_113] : memref<16x4xf32, #tpu.memory_space<vmem>>, vector<16x1xf32>
    tpu.vector_store %arg13[%c0_112, %c1_113], %314 {strides = array<i32>} : memref<16x4xf32, #tpu.memory_space<vmem>>, vector<16x1xf32>,
    %362 = arith.subf %310, %354 : vector<16x1xf32>
    %c0_114 = arith.constant 0 : index
    %c2 = arith.constant 2 : index
    %363 = vector.load %arg13[%c0_114, %c2] : memref<16x4xf32, #tpu.memory_space<vmem>>, vector<16x1xf32>
    tpu.vector_store %arg13[%c0_114, %c2], %362 {strides = array<i32>} : memref<16x4xf32, #tpu.memory_space<vmem>>, vector<16x1xf32>,
    %364 = arith.subf %314, %359 : vector<16x1xf32>
    %c0_115 = arith.constant 0 : index
    %c3 = arith.constant 3 : index
    %365 = vector.load %arg13[%c0_115, %c3] : memref<16x4xf32, #tpu.memory_space<vmem>>, vector<16x1xf32>
    tpu.vector_store %arg13[%c0_115, %c3], %364 {strides = array<i32>} : memref<16x4xf32, #tpu.memory_space<vmem>>, vector<16x1xf32>,
    return
  }
}

</mosaic_0001>

<llo_original>
// kernel: tpu_custom_call.1
$region0: #{tpu_custom_call.1}
  #allocation0 [shape = 'u32[]', space=smem, size = 0x4, offset = 0x4, fixed_abs, tag = 'smem constant byte address 0x4 - core index']
  #allocation1 [shape = 'u32[144,128]{1,0:T(1,128)}', space=vmem, size = 0x12000, scoped, tag = 'internal scratch']
  %s0 = inlined_call_operand.vmem [shape: f32[16,32], index: 0, kind: input, shape index: {}]
  %s1 = inlined_call_operand.vmem [shape: f32[16,1], index: 1, kind: input, shape index: {}]
  %s2 = inlined_call_operand.vmem [shape: bf16[2,32,192], index: 2, kind: input, shape index: {}]
  %s3 = inlined_call_operand.vmem [shape: f32[2,10,32], index: 3, kind: input, shape index: {}]
  %s4 = inlined_call_operand.vmem [shape: f32[16,16], index: 4, kind: input, shape index: {}]
  %s5 = inlined_call_operand.vmem [shape: f32[1,32], index: 5, kind: input, shape index: {}]
  %s6 = inlined_call_operand.vmem [shape: f32[1,32], index: 6, kind: input, shape index: {}]
  %s7 = inlined_call_operand.vmem [shape: f32[16,32], index: 7, kind: input, shape index: {}]
  %s8 = inlined_call_operand.vmem [shape: f32[16,32], index: 8, kind: input, shape index: {}]
  %s9 = inlined_call_operand.vmem [shape: f32[2,8,8], index: 9, kind: input, shape index: {}]
  %s10 = inlined_call_operand.vmem [shape: f32[2,8,6], index: 10, kind: input, shape index: {}]
  %s11 = inlined_call_operand.vmem [shape: f32[16,6], index: 11, kind: input, shape index: {}]
  %s12 = inlined_call_operand.vmem [shape: f32[16,6], index: 12, kind: input, shape index: {}]
  %s13 = inlined_call_operand.vmem [shape: f32[16,4], index: 13, kind: output, shape index: {}]
  %s14 = sld [smem:[#allocation0]]
  $region62: #{tpu_custom_call.1} parent=0
    _
  %s16 = ssub.s32 1, %s14
  %s17 = scalar_select 0, %s16, %s14
  // Predicated region
  $region2: #{tpu_custom_call.1} parent=0 // pred_check
    _
  $region3: #{tpu_custom_call.1} parent=0 // pred_check_branch
    %19 = sbr.rel (0) target = $region5
  $region4: #{tpu_custom_call.1} parent=0 // pred_region
    _
  $region5: #{tpu_custom_call.1} parent=0 // pred_fallthru
    _
  // Predicated region
  $region6: #{tpu_custom_call.1} parent=0 // pred_check
    _
  $region7: #{tpu_custom_call.1} parent=0 // pred_check_branch
    %21 = sbr.rel (0) target = $region9
  $region8: #{tpu_custom_call.1} parent=0 // pred_region
    _
  $region9: #{tpu_custom_call.1} parent=0 // pred_fallthru
    _
  // Predicated region
  $region10: #{tpu_custom_call.1} parent=0 // pred_check
    _
  $region11: #{tpu_custom_call.1} parent=0 // pred_check_branch
    %23 = sbr.rel (0) target = $region13
  $region12: #{tpu_custom_call.1} parent=0 // pred_region
    _
  $region13: #{tpu_custom_call.1} parent=0 // pred_fallthru
    _
  // Predicated region
  $region14: #{tpu_custom_call.1} parent=0 // pred_check
    _
  $region15: #{tpu_custom_call.1} parent=0 // pred_check_branch
    %25 = sbr.rel (0) target = $region17
  $region16: #{tpu_custom_call.1} parent=0 // pred_region
    _
  $region17: #{tpu_custom_call.1} parent=0 // pred_fallthru
    _
  // Predicated region
  $region18: #{tpu_custom_call.1} parent=0 // pred_check
    _
  $region19: #{tpu_custom_call.1} parent=0 // pred_check_branch
    %27 = sbr.rel (0) target = $region21
  $region20: #{tpu_custom_call.1} parent=0 // pred_region
    _
  $region21: #{tpu_custom_call.1} parent=0 // pred_fallthru
    _
  // Predicated region
  $region22: #{tpu_custom_call.1} parent=0 // pred_check
    _
  $region23: #{tpu_custom_call.1} parent=0 // pred_check_branch
    %29 = sbr.rel (0) target = $region25
  $region24: #{tpu_custom_call.1} parent=0 // pred_region
    _
  $region25: #{tpu_custom_call.1} parent=0 // pred_fallthru
    _
  // Predicated region
  $region26: #{tpu_custom_call.1} parent=0 // pred_check
    _
  $region27: #{tpu_custom_call.1} parent=0 // pred_check_branch
    %31 = sbr.rel (0) target = $region29
  $region28: #{tpu_custom_call.1} parent=0 // pred_region
    _
  $region29: #{tpu_custom_call.1} parent=0 // pred_fallthru
    _
  // Predicated region
  $region30: #{tpu_custom_call.1} parent=0 // pred_check
    _
  $region31: #{tpu_custom_call.1} parent=0 // pred_check_branch
    %33 = sbr.rel (0) target = $region33
  $region32: #{tpu_custom_call.1} parent=0 // pred_region
    _
  $region33: #{tpu_custom_call.1} parent=0 // pred_fallthru
    _
  // Predicated region
  $region34: #{tpu_custom_call.1} parent=0 // pred_check
    _
  $region35: #{tpu_custom_call.1} parent=0 // pred_check_branch
    %35 = sbr.rel (0) target = $region37
  $region36: #{tpu_custom_call.1} parent=0 // pred_region
    _
  $region37: #{tpu_custom_call.1} parent=0 // pred_fallthru
    _
  // Predicated region
  $region38: #{tpu_custom_call.1} parent=0 // pred_check
    _
  $region39: #{tpu_custom_call.1} parent=0 // pred_check_branch
    %37 = sbr.rel (0) target = $region41
  $region40: #{tpu_custom_call.1} parent=0 // pred_region
    _
  $region41: #{tpu_custom_call.1} parent=0 // pred_fallthru
    _
  // Predicated region
  $region42: #{tpu_custom_call.1} parent=0 // pred_check
    _
  $region43: #{tpu_custom_call.1} parent=0 // pred_check_branch
    %39 = sbr.rel (0) target = $region45
  $region44: #{tpu_custom_call.1} parent=0 // pred_region
    _
  $region45: #{tpu_custom_call.1} parent=0 // pred_fallthru
    _
  // Predicated region
  $region46: #{tpu_custom_call.1} parent=0 // pred_check
    _
  $region47: #{tpu_custom_call.1} parent=0 // pred_check_branch
    %41 = sbr.rel (0) target = $region49
  $region48: #{tpu_custom_call.1} parent=0 // pred_region
    _
  $region49: #{tpu_custom_call.1} parent=0 // pred_fallthru
    _
  // Predicated region
  $region50: #{tpu_custom_call.1} parent=0 // pred_check
    _
  $region51: #{tpu_custom_call.1} parent=0 // pred_check_branch
    %43 = sbr.rel (0) target = $region53
  $region52: #{tpu_custom_call.1} parent=0 // pred_region
    _
  $region53: #{tpu_custom_call.1} parent=0 // pred_fallthru
    _
  %v45 = vld [vmem:[%s0] sm:$0xff]
  %v46 = vld [vmem:[%s0 + $0x8] sm:$0xff]
  %v47 = vld [vmem:[%s1] sm:$0xff]
  %v48 = vld [vmem:[%s1 + $0x8] sm:$0xff]
  %v49 = vld [vmem:[%s4] sm:$0xff]
  %v50 = vld [vmem:[%s4 + $0x8] sm:$0xff]
  %v51 = vld [vmem:[%s2] sm:$0xff]
  %v52 = vld [vmem:[%s2 + $0x8] sm:$0xff]
  %v53 = vld [vmem:[%s2 + $0x10] sm:$0xff]
  %v54 = vld [vmem:[%s2 + $0x18] sm:$0xff]
  %v55 = vld [vmem:[%s3] sm:$0xff]
  %v56 = vld [vmem:[%s3 + $0x8] sm:$0x3]
  %vm57 = vcmask 261120
  %v58 = vsel %vm57, %v45, 0.0
  %59 = vadd.xlane.f32.xlu0 %v58
  %v60 = vpop.xlane.xlu0 %59
  %v61 = vsel %vm57, %v46, 0.0
  %62 = vadd.xlane.f32.xlu0 %v61
  %v63 = vpop.xlane.xlu0 %62
  %v64 = vrcp.pop 32.0
  %v65 = vmul.f32 %v60, %v64
  %v66 = vmul.f32 %v63, %v64
  %v67 = vsub.f32 %v45, %v65
  %v68 = vsub.f32 %v46, %v66
  %v69 = vmul.f32 %v67, %v67
  %v70 = vmul.f32 %v68, %v68
  %v71 = vsel %vm57, %v69, 0.0
  %72 = vadd.xlane.f32.xlu0 %v71
  %v73 = vpop.xlane.xlu0 %72
  %v74 = vsel %vm57, %v70, 0.0
  %75 = vadd.xlane.f32.xlu0 %v74
  %v76 = vpop.xlane.xlu0 %75
  %v77 = vmul.f32 %v73, %v64
  %v78 = vmul.f32 %v76, %v64
  %v79 = vadd.f32 %v77, 1e-08
  %v80 = vadd.f32 %v78, 1e-08
  %v81 = vrsqrt.pop %v79
  %v82 = vrsqrt.pop %v80
  %v83 = vmul.f32 %v67, %v81
  %v84 = vmul.f32 %v68, %v82
  %v85 = vlaneseq
  %v86 = vshrl.u32 %v85, 7
  %v87 = vsub.s32 0, %v86
  %v88 = vrot.slane %v55, %v87
  %v89 = vmul.f32 %v83, %v88
  %v90 = vmul.f32 %v84, %v88
  %v91 = vlaneseq
  %v92 = vshrl.u32 %v91, 7
  %v93 = vsub.s32 1, %v92
  %v94 = vrot.slane %v55, %v93
  %v95 = vadd.f32 %v89, %v94
  %v96 = vadd.f32 %v90, %v94
  %v97 = vpack.c.bf16 %v96, %v95
  %v98 = vpack.c.bf16 %v46, %v45
  %v99 = vlaneseq
  %v100 = vshrl.u32 %v99, 7
  %v101 = vsub.s32 2, %v100
  %v102 = vrot.slane %v55, %v101
  %v107 = vunpack.c.l.b16 %v51
  %v108 = vunpack.c.l.b16 %v52
  %v109 = vunpack.c.l.b16 %v53
  %v110 = vunpack.c.l.b16 %v54
  %v111 = vpack.c.b16 %v108, %v107
  %v112 = vpack.c.b16 %v110, %v109
  %v116 = vsel %vm57, %v97, 0
  %118 = vmatprep.subr.bf16.mxu0 0
  %119 = vmatpush1.bf16.msra.mxu0 %v111
  %120 = vmatprep.subr.bf16.mxu0 0
  %121 = vmatpush1.bf16.msra.mxu0 %v112
  %122 = vmatprep.subr.bf16.mxu0 0
  %123 = vmatpush1.bf16.msra.mxu0 0
  %124 = vmatprep.subr.bf16.mxu0 0
  %125 = vmatpush1.bf16.msra.mxu0 0
  %126 = vmatprep.subr.bf16.mxu0 0
  %127 = vmatpush1.bf16.msra.mxu0 0
  %128 = vmatprep.subr.bf16.mxu0 0
  %129 = vmatpush1.bf16.msra.mxu0 0
  %130 = vmatprep.subr.bf16.mxu0 0
  %131 = vmatpush1.bf16.msra.mxu0 0
  %132 = vmatprep.subr.bf16.mxu0 0
  %133 = vmatpush1.bf16.msra.mxu0 0
  %134 = vmatprep.subr.bf16.mxu0 0
  %135 = vmatpush1.bf16.msra.mxu0 0
  %136 = vmatprep.subr.bf16.mxu0 0
  %137 = vmatpush1.bf16.msra.mxu0 0
  %138 = vmatprep.subr.bf16.mxu0 0
  %139 = vmatpush1.bf16.msra.mxu0 0
  %140 = vmatprep.subr.bf16.mxu0 0
  %141 = vmatpush1.bf16.msra.mxu0 0
  %142 = vmatprep.subr.bf16.mxu0 0
  %143 = vmatpush1.bf16.msra.mxu0 0
  %144 = vmatprep.subr.bf16.mxu0 0
  %145 = vmatpush1.bf16.msra.mxu0 0
  %146 = vmatprep.subr.bf16.mxu0 0
  %147 = vmatpush1.bf16.msra.mxu0 0
  %148 = vmatprep.subr.bf16.mxu0 0
  %149 = vmatpush1.bf16.msra.mxu0 0
  %150 = vmatprep.mubr.bf16.mxu0 0
  %151 = vmatmul.mubr.bf16.gmra.mrb[0].mxu0 %v116
  %v152 = vpop.f32.mrb[0].mxu0
  %v153 = vadd.f32 %v102, %v152
  %v154 = vpop.f32.mrb[0].mxu0
  %v155 = vpop.f32.mrb[0].mxu0
  %v156 = vadd.f32 %v102, %v155
  %v157 = vpop.f32.mrb[0].mxu0
  %158 = vdwg.mxu0
  %159 = vrot.lane.b32.xlu0 %v111, 96
  %v160 = vpop.permute.xlu0 %159
  %161 = vrot.lane.b32.xlu0 %v112, 96
  %v162 = vpop.permute.xlu0 %161
  %v166 = vsel %vm57, %v98, 0
  %168 = vmatprep.subr.bf16.mxu0 0
  %169 = vmatpush1.bf16.msra.mxu0 %v160
  %170 = vmatprep.subr.bf16.mxu0 0
  %171 = vmatpush1.bf16.msra.mxu0 %v162
  %172 = vmatprep.subr.bf16.mxu0 0
  %173 = vmatpush1.bf16.msra.mxu0 0
  %174 = vmatprep.subr.bf16.mxu0 0
  %175 = vmatpush1.bf16.msra.mxu0 0
  %176 = vmatprep.subr.bf16.mxu0 0
  %177 = vmatpush1.bf16.msra.mxu0 0
  %178 = vmatprep.subr.bf16.mxu0 0
  %179 = vmatpush1.bf16.msra.mxu0 0
  %180 = vmatprep.subr.bf16.mxu0 0
  %181 = vmatpush1.bf16.msra.mxu0 0
  %182 = vmatprep.subr.bf16.mxu0 0
  %183 = vmatpush1.bf16.msra.mxu0 0
  %184 = vmatprep.subr.bf16.mxu0 0
  %185 = vmatpush1.bf16.msra.mxu0 0
  %186 = vmatprep.subr.bf16.mxu0 0
  %187 = vmatpush1.bf16.msra.mxu0 0
  %188 = vmatprep.subr.bf16.mxu0 0
  %189 = vmatpush1.bf16.msra.mxu0 0
  %190 = vmatprep.subr.bf16.mxu0 0
  %191 = vmatpush1.bf16.msra.mxu0 0
  %192 = vmatprep.subr.bf16.mxu0 0
  %193 = vmatpush1.bf16.msra.mxu0 0
  %194 = vmatprep.subr.bf16.mxu0 0
  %195 = vmatpush1.bf16.msra.mxu0 0
  %196 = vmatprep.subr.bf16.mxu0 0
  %197 = vmatpush1.bf16.msra.mxu0 0
  %198 = vmatprep.subr.bf16.mxu0 0
  %199 = vmatpush1.bf16.msra.mxu0 0
  %200 = vmatprep.mubr.bf16.mxu0 0
  %201 = vmatmul.mubr.bf16.gmra.mrb[0].mxu0 %v166
  %v202 = vpop.f32.mrb[0].mxu0
  %v203 = vadd.f32 0.0, %v202
  %v204 = vpop.f32.mrb[0].mxu0
  %v205 = vpop.f32.mrb[0].mxu0
  %v206 = vadd.f32 0.0, %v205
  %v207 = vpop.f32.mrb[0].mxu0
  %208 = vdwg.mxu0
  %v209 = vlaneseq
  %v210 = vshrl.u32 %v209, 7
  %v211 = vsub.s32 3, %v210
  %v212 = vrot.slane %v55, %v211
  %v213 = vadd.f32 %v203, %v212
  %v214 = vadd.f32 %v206, %v212
  %v215 = vlaneseq
  %v216 = vshrl.u32 %v215, 7
  %v217 = vsub.s32 4, %v216
  %v218 = vrot.slane %v55, %v217
  %220 = vrot.lane.b32.xlu0 %v218, 32
  %v221 = vpop.permute.xlu0 %220
  %v223 = vadd.f32 %v203, %v221
  %v224 = vadd.f32 %v206, %v221
  %vm225 = vcmask 130048
  %v227 = vsel %vm225, %v153, 0
  %v230 = vsel %vm225, %v156, 0
  %v233 = vsel %vm225, %v213, 0
  %v236 = vsel %vm225, %v214, 0
  %238 = vmatprep.subr.mxu0 0.0
  %239 = vmatpush1.xpose.msra.mxu0 %v233
  %240 = vmatprep.subr.mxu0 0.0
  %241 = vmatpush1.xpose.msra.mxu0 %v236
  %242 = vmatprep.subr.mxu0 0.0
  %243 = vmatpush1.xpose.msra.mxu0 0.0
  %244 = vmatprep.subr.mxu0 0.0
  %245 = vmatpush1.xpose.msra.mxu0 0.0
  %246 = vmatprep.subr.mxu0 0.0
  %247 = vmatpush1.xpose.msra.mxu0 0.0
  %248 = vmatprep.subr.mxu0 0.0
  %249 = vmatpush1.xpose.msra.mxu0 0.0
  %250 = vmatprep.subr.mxu0 0.0
  %251 = vmatpush1.xpose.msra.mxu0 0.0
  %252 = vmatprep.subr.mxu0 0.0
  %253 = vmatpush1.xpose.msra.mxu0 0.0
  %254 = vmatprep.subr.mxu0 0.0
  %255 = vmatpush1.xpose.msra.mxu0 0.0
  %256 = vmatprep.subr.mxu0 0.0
  %257 = vmatpush1.xpose.msra.mxu0 0.0
  %258 = vmatprep.subr.mxu0 0.0
  %259 = vmatpush1.xpose.msra.mxu0 0.0
  %260 = vmatprep.subr.mxu0 0.0
  %261 = vmatpush1.xpose.msra.mxu0 0.0
  %262 = vmatprep.subr.mxu0 0.0
  %263 = vmatpush1.xpose.msra.mxu0 0.0
  %264 = vmatprep.subr.mxu0 0.0
  %265 = vmatpush1.xpose.msra.mxu0 0.0
  %266 = vmatprep.subr.mxu0 0.0
  %267 = vmatpush1.xpose.msra.mxu0 0.0
  %268 = vmatprep.subr.mxu0 0.0
  %269 = vmatpush1.xpose.msra.mxu0 0.0
  %270 = vmatprep.subr.mxu0 0.0
  %271 = vmatpush1.xpose.msra.mxu0 0.0
  %272 = vmatprep.subr.mxu0 0.0
  %273 = vmatpush1.xpose.msra.mxu0 0.0
  %274 = vmatprep.subr.mxu0 0.0
  %275 = vmatpush1.xpose.msra.mxu0 0.0
  %276 = vmatprep.subr.mxu0 0.0
  %277 = vmatpush1.xpose.msra.mxu0 0.0
  %278 = vmatprep.subr.mxu0 0.0
  %279 = vmatpush1.xpose.msra.mxu0 0.0
  %280 = vmatprep.subr.mxu0 0.0
  %281 = vmatpush1.xpose.msra.mxu0 0.0
  %282 = vmatprep.subr.mxu0 0.0
  %283 = vmatpush1.xpose.msra.mxu0 0.0
  %284 = vmatprep.subr.mxu0 0.0
  %285 = vmatpush1.xpose.msra.mxu0 0.0
  %286 = vmatprep.subr.mxu0 0.0
  %287 = vmatpush1.xpose.msra.mxu0 0.0
  %288 = vmatprep.subr.mxu0 0.0
  %289 = vmatpush1.xpose.msra.mxu0 0.0
  %290 = vmatprep.subr.mxu0 0.0
  %291 = vmatpush1.xpose.msra.mxu0 0.0
  %292 = vmatprep.subr.mxu0 0.0
  %293 = vmatpush1.xpose.msra.mxu0 0.0
  %294 = vmatprep.subr.mxu0 0.0
  %295 = vmatpush1.xpose.msra.mxu0 0.0
  %296 = vmatprep.subr.mxu0 0.0
  %297 = vmatpush1.xpose.msra.mxu0 0.0
  %298 = vmatprep.subr.mxu0 0.0
  %299 = vmatpush1.xpose.msra.mxu0 0.0
  %300 = vmatprep.subr.mxu0 0.0
  %301 = vmatpush1.xpose.msra.mxu0 0.0
  %302 = vmatprep.mubr.f32.mxu0 0.0
  %303 = vmatmul.mubr.f32.gmra.mrb[0].mxu0 %v227
  %v304 = vpop.f32.mrb[0].mxu0
  %v305 = vadd.f32 0.0, %v304
  %v306 = vpop.f32.mrb[0].mxu0
  %307 = vmatprep.mubr.f32.mxu0 0.0
  %308 = vmatmul.mubr.f32.gmra.mrb[0].mxu0 %v230
  %v309 = vpop.f32.mrb[0].mxu0
  %v310 = vadd.f32 0.0, %v309
  %v311 = vpop.f32.mrb[0].mxu0
  %312 = vdwg.mxu0
  %v313 = vmul.f32 %v305, 0.25
  %v314 = vmul.f32 %v310, 0.25
  %v315 = vadd.f32 %v313, %v49
  %v316 = vadd.f32 %v314, %v50
  %v317 = vsel %vm225, %v315, -inf
  %318 = vmax.xlane.f32.xlu0 %v317
  %v319 = vpop.xlane.xlu0 %318
  %v320 = vsel %vm225, %v316, -inf
  %321 = vmax.xlane.f32.xlu0 %v320
  %v322 = vpop.xlane.xlu0 %321
  %v323 = vsub.f32 %v315, %v319
  %v324 = vsub.f32 %v316, %v322
  %v325 = vmul.f32 %v323, 1.442695
  %v326 = vpow.pop %v325
  %v327 = vmul.f32 %v324, 1.442695
  %v328 = vpow.pop %v327
  %v329 = vsel %vm225, %v326, 0.0
  %330 = vadd.xlane.f32.xlu0 %v329
  %v331 = vpop.xlane.xlu0 %330
  %v332 = vsel %vm225, %v328, 0.0
  %333 = vadd.xlane.f32.xlu0 %v332
  %v334 = vpop.xlane.xlu0 %333
  %v335 = vrcp.pop %v331
  %v336 = vrcp.pop %v334
  %v337 = vmul.f32 %v326, %v335
  %v338 = vmul.f32 %v328, %v336
  %v339 = vpack.c.bf16 %v338, %v337
  %v340 = vpack.c.bf16 %v224, %v223
  %342 = vrot.lane.b32.xlu0 %v340, 96
  %v343 = vpop.permute.xlu0 %342
  %v346 = vsel %vm225, %v339, 0
  %348 = vmatprep.subr.bf16.mxu0 0
  %349 = vmatpush1.bf16.msra.mxu0 %v343
  %350 = vmatprep.subr.bf16.mxu0 0
  %351 = vmatpush1.bf16.msra.mxu0 0
  %352 = vmatprep.subr.bf16.mxu0 0
  %353 = vmatpush1.bf16.msra.mxu0 0
  %354 = vmatprep.subr.bf16.mxu0 0
  %355 = vmatpush1.bf16.msra.mxu0 0
  %356 = vmatprep.subr.bf16.mxu0 0
  %357 = vmatpush1.bf16.msra.mxu0 0
  %358 = vmatprep.subr.bf16.mxu0 0
  %359 = vmatpush1.bf16.msra.mxu0 0
  %360 = vmatprep.subr.bf16.mxu0 0
  %361 = vmatpush1.bf16.msra.mxu0 0
  %362 = vmatprep.subr.bf16.mxu0 0
  %363 = vmatpush1.bf16.msra.mxu0 0
  %364 = vmatprep.subr.bf16.mxu0 0
  %365 = vmatpush1.bf16.msra.mxu0 0
  %366 = vmatprep.subr.bf16.mxu0 0
  %367 = vmatpush1.bf16.msra.mxu0 0
  %368 = vmatprep.subr.bf16.mxu0 0
  %369 = vmatpush1.bf16.msra.mxu0 0
  %370 = vmatprep.subr.bf16.mxu0 0
  %371 = vmatpush1.bf16.msra.mxu0 0
  %372 = vmatprep.subr.bf16.mxu0 0
  %373 = vmatpush1.bf16.msra.mxu0 0
  %374 = vmatprep.subr.bf16.mxu0 0
  %375 = vmatpush1.bf16.msra.mxu0 0
  %376 = vmatprep.subr.bf16.mxu0 0
  %377 = vmatpush1.bf16.msra.mxu0 0
  %378 = vmatprep.subr.bf16.mxu0 0
  %379 = vmatpush1.bf16.msra.mxu0 0
  %380 = vmatprep.mubr.bf16.mxu0 0
  %381 = vmatmul.mubr.bf16.gmra.mrb[0].mxu0 %v346
  %v382 = vpop.f32.mrb[0].mxu0
  %v383 = vadd.f32 0.0, %v382
  %v384 = vpop.f32.mrb[0].mxu0
  %v385 = vpop.f32.mrb[0].mxu0
  %v386 = vadd.f32 0.0, %v385
  %v387 = vpop.f32.mrb[0].mxu0
  %388 = vdwg.mxu0
  %v389 = vpack.c.bf16 %v386, %v383
  %390 = vrot.lane.b32.xlu0 %v153, 112
  %v391 = vpop.permute.xlu0 %390
  %392 = vrot.lane.b32.xlu0 %v156, 112
  %v393 = vpop.permute.xlu0 %392
  %394 = vrot.lane.b32.xlu0 %v213, 112
  %v395 = vpop.permute.xlu0 %394
  %396 = vrot.lane.b32.xlu0 %v214, 112
  %v397 = vpop.permute.xlu0 %396
  %v398 = vsel %vm225, %v391, 0
  %v400 = vsel %vm225, %v393, 0
  %v402 = vsel %vm225, %v395, 0
  %v404 = vsel %vm225, %v397, 0
  %406 = vmatprep.subr.mxu0 0.0
  %407 = vmatpush1.xpose.msra.mxu0 %v402
  %408 = vmatprep.subr.mxu0 0.0
  %409 = vmatpush1.xpose.msra.mxu0 %v404
  %410 = vmatprep.subr.mxu0 0.0
  %411 = vmatpush1.xpose.msra.mxu0 0.0
  %412 = vmatprep.subr.mxu0 0.0
  %413 = vmatpush1.xpose.msra.mxu0 0.0
  %414 = vmatprep.subr.mxu0 0.0
  %415 = vmatpush1.xpose.msra.mxu0 0.0
  %416 = vmatprep.subr.mxu0 0.0
  %417 = vmatpush1.xpose.msra.mxu0 0.0
  %418 = vmatprep.subr.mxu0 0.0
  %419 = vmatpush1.xpose.msra.mxu0 0.0
  %420 = vmatprep.subr.mxu0 0.0
  %421 = vmatpush1.xpose.msra.mxu0 0.0
  %422 = vmatprep.subr.mxu0 0.0
  %423 = vmatpush1.xpose.msra.mxu0 0.0
  %424 = vmatprep.subr.mxu0 0.0
  %425 = vmatpush1.xpose.msra.mxu0 0.0
  %426 = vmatprep.subr.mxu0 0.0
  %427 = vmatpush1.xpose.msra.mxu0 0.0
  %428 = vmatprep.subr.mxu0 0.0
  %429 = vmatpush1.xpose.msra.mxu0 0.0
  %430 = vmatprep.subr.mxu0 0.0
  %431 = vmatpush1.xpose.msra.mxu0 0.0
  %432 = vmatprep.subr.mxu0 0.0
  %433 = vmatpush1.xpose.msra.mxu0 0.0
  %434 = vmatprep.subr.mxu0 0.0
  %435 = vmatpush1.xpose.msra.mxu0 0.0
  %436 = vmatprep.subr.mxu0 0.0
  %437 = vmatpush1.xpose.msra.mxu0 0.0
  %438 = vmatprep.subr.mxu0 0.0
  %439 = vmatpush1.xpose.msra.mxu0 0.0
  %440 = vmatprep.subr.mxu0 0.0
  %441 = vmatpush1.xpose.msra.mxu0 0.0
  %442 = vmatprep.subr.mxu0 0.0
  %443 = vmatpush1.xpose.msra.mxu0 0.0
  %444 = vmatprep.subr.mxu0 0.0
  %445 = vmatpush1.xpose.msra.mxu0 0.0
  %446 = vmatprep.subr.mxu0 0.0
  %447 = vmatpush1.xpose.msra.mxu0 0.0
  %448 = vmatprep.subr.mxu0 0.0
  %449 = vmatpush1.xpose.msra.mxu0 0.0
  %450 = vmatprep.subr.mxu0 0.0
  %451 = vmatpush1.xpose.msra.mxu0 0.0
  %452 = vmatprep.subr.mxu0 0.0
  %453 = vmatpush1.xpose.msra.mxu0 0.0
  %454 = vmatprep.subr.mxu0 0.0
  %455 = vmatpush1.xpose.msra.mxu0 0.0
  %456 = vmatprep.subr.mxu0 0.0
  %457 = vmatpush1.xpose.msra.mxu0 0.0
  %458 = vmatprep.subr.mxu0 0.0
  %459 = vmatpush1.xpose.msra.mxu0 0.0
  %460 = vmatprep.subr.mxu0 0.0
  %461 = vmatpush1.xpose.msra.mxu0 0.0
  %462 = vmatprep.subr.mxu0 0.0
  %463 = vmatpush1.xpose.msra.mxu0 0.0
  %464 = vmatprep.subr.mxu0 0.0
  %465 = vmatpush1.xpose.msra.mxu0 0.0
  %466 = vmatprep.subr.mxu0 0.0
  %467 = vmatpush1.xpose.msra.mxu0 0.0
  %468 = vmatprep.subr.mxu0 0.0
  %469 = vmatpush1.xpose.msra.mxu0 0.0
  %470 = vmatprep.mubr.f32.mxu0 0.0
  %471 = vmatmul.mubr.f32.gmra.mrb[0].mxu0 %v398
  %v472 = vpop.f32.mrb[0].mxu0
  %v473 = vadd.f32 0.0, %v472
  %v474 = vpop.f32.mrb[0].mxu0
  %475 = vmatprep.mubr.f32.mxu0 0.0
  %476 = vmatmul.mubr.f32.gmra.mrb[0].mxu0 %v400
  %v477 = vpop.f32.mrb[0].mxu0
  %v478 = vadd.f32 0.0, %v477
  %v479 = vpop.f32.mrb[0].mxu0
  %480 = vdwg.mxu0
  %v481 = vmul.f32 %v473, 0.25
  %v482 = vmul.f32 %v478, 0.25
  %v483 = vadd.f32 %v481, %v49
  %v484 = vadd.f32 %v482, %v50
  %v485 = vsel %vm225, %v483, -inf
  %486 = vmax.xlane.f32.xlu0 %v485
  %v487 = vpop.xlane.xlu0 %486
  %v488 = vsel %vm225, %v484, -inf
  %489 = vmax.xlane.f32.xlu0 %v488
  %v490 = vpop.xlane.xlu0 %489
  %v491 = vsub.f32 %v483, %v487
  %v492 = vsub.f32 %v484, %v490
  %v493 = vmul.f32 %v491, 1.442695
  %v494 = vpow.pop %v493
  %v495 = vmul.f32 %v492, 1.442695
  %v496 = vpow.pop %v495
  %v497 = vsel %vm225, %v494, 0.0
  %498 = vadd.xlane.f32.xlu0 %v497
  %v499 = vpop.xlane.xlu0 %498
  %v500 = vsel %vm225, %v496, 0.0
  %501 = vadd.xlane.f32.xlu0 %v500
  %v502 = vpop.xlane.xlu0 %501
  %v503 = vrcp.pop %v499
  %v504 = vrcp.pop %v502
  %v505 = vmul.f32 %v494, %v503
  %v506 = vmul.f32 %v496, %v504
  %v507 = vpack.c.bf16 %v506, %v505
  %508 = vrot.lane.b32.xlu0 %v340, 80
  %v509 = vpop.permute.xlu0 %508
  %v512 = vsel %vm225, %v507, 0
  %514 = vmatprep.subr.bf16.mxu0 0
  %515 = vmatpush1.bf16.msra.mxu0 %v509
  %516 = vmatprep.subr.bf16.mxu0 0
  %517 = vmatpush1.bf16.msra.mxu0 0
  %518 = vmatprep.subr.bf16.mxu0 0
  %519 = vmatpush1.bf16.msra.mxu0 0
  %520 = vmatprep.subr.bf16.mxu0 0
  %521 = vmatpush1.bf16.msra.mxu0 0
  %522 = vmatprep.subr.bf16.mxu0 0
  %523 = vmatpush1.bf16.msra.mxu0 0
  %524 = vmatprep.subr.bf16.mxu0 0
  %525 = vmatpush1.bf16.msra.mxu0 0
  %526 = vmatprep.subr.bf16.mxu0 0
  %527 = vmatpush1.bf16.msra.mxu0 0
  %528 = vmatprep.subr.bf16.mxu0 0
  %529 = vmatpush1.bf16.msra.mxu0 0
  %530 = vmatprep.subr.bf16.mxu0 0
  %531 = vmatpush1.bf16.msra.mxu0 0
  %532 = vmatprep.subr.bf16.mxu0 0
  %533 = vmatpush1.bf16.msra.mxu0 0
  %534 = vmatprep.subr.bf16.mxu0 0
  %535 = vmatpush1.bf16.msra.mxu0 0
  %536 = vmatprep.subr.bf16.mxu0 0
  %537 = vmatpush1.bf16.msra.mxu0 0
  %538 = vmatprep.subr.bf16.mxu0 0
  %539 = vmatpush1.bf16.msra.mxu0 0
  %540 = vmatprep.subr.bf16.mxu0 0
  %541 = vmatpush1.bf16.msra.mxu0 0
  %542 = vmatprep.subr.bf16.mxu0 0
  %543 = vmatpush1.bf16.msra.mxu0 0
  %544 = vmatprep.subr.bf16.mxu0 0
  %545 = vmatpush1.bf16.msra.mxu0 0
  %546 = vmatprep.mubr.bf16.mxu0 0
  %547 = vmatmul.mubr.bf16.gmra.mrb[0].mxu0 %v512
  %v548 = vpop.f32.mrb[0].mxu0
  %v549 = vadd.f32 0.0, %v548
  %v550 = vpop.f32.mrb[0].mxu0
  %v551 = vpop.f32.mrb[0].mxu0
  %v552 = vadd.f32 0.0, %v551
  %v553 = vpop.f32.mrb[0].mxu0
  %554 = vdwg.mxu0
  %v555 = vpack.c.bf16 %v552, %v549
  %556 = vrot.lane.b32.xlu0 %v112, 32
  %v557 = vpop.permute.xlu0 %556
  %v560 = vsel %vm225, %v555, 0
  %562 = vmatprep.subr.bf16.mxu0 0
  %563 = vmatpush1.bf16.msra.mxu0 %v557
  %564 = vmatprep.subr.bf16.mxu0 0
  %565 = vmatpush1.bf16.msra.mxu0 0
  %566 = vmatprep.subr.bf16.mxu0 0
  %567 = vmatpush1.bf16.msra.mxu0 0
  %568 = vmatprep.subr.bf16.mxu0 0
  %569 = vmatpush1.bf16.msra.mxu0 0
  %570 = vmatprep.subr.bf16.mxu0 0
  %571 = vmatpush1.bf16.msra.mxu0 0
  %572 = vmatprep.subr.bf16.mxu0 0
  %573 = vmatpush1.bf16.msra.mxu0 0
  %574 = vmatprep.subr.bf16.mxu0 0
  %575 = vmatpush1.bf16.msra.mxu0 0
  %576 = vmatprep.subr.bf16.mxu0 0
  %577 = vmatpush1.bf16.msra.mxu0 0
  %578 = vmatprep.subr.bf16.mxu0 0
  %579 = vmatpush1.bf16.msra.mxu0 0
  %580 = vmatprep.subr.bf16.mxu0 0
  %581 = vmatpush1.bf16.msra.mxu0 0
  %582 = vmatprep.subr.bf16.mxu0 0
  %583 = vmatpush1.bf16.msra.mxu0 0
  %584 = vmatprep.subr.bf16.mxu0 0
  %585 = vmatpush1.bf16.msra.mxu0 0
  %586 = vmatprep.subr.bf16.mxu0 0
  %587 = vmatpush1.bf16.msra.mxu0 0
  %588 = vmatprep.subr.bf16.mxu0 0
  %589 = vmatpush1.bf16.msra.mxu0 0
  %590 = vmatprep.subr.bf16.mxu0 0
  %591 = vmatpush1.bf16.msra.mxu0 0
  %592 = vmatprep.subr.bf16.mxu0 0
  %593 = vmatpush1.bf16.msra.mxu0 0
  %594 = vmatprep.mubr.bf16.mxu0 0
  %595 = vmatmul.mubr.bf16.gmra.mrb[0].mxu0 %v560
  %v596 = vpop.f32.mrb[0].mxu0
  %v597 = vadd.f32 0.0, %v596
  %v598 = vpop.f32.mrb[0].mxu0
  %v599 = vpop.f32.mrb[0].mxu0
  %v600 = vadd.f32 0.0, %v599
  %v601 = vpop.f32.mrb[0].mxu0
  %602 = vdwg.mxu0
  %603 = vrot.lane.b32.xlu0 %v111, 32
  %v604 = vpop.permute.xlu0 %603
  %v607 = vsel %vm225, %v389, 0
  %609 = vmatprep.subr.bf16.mxu0 0
  %610 = vmatpush1.bf16.msra.mxu0 %v604
  %611 = vmatprep.subr.bf16.mxu0 0
  %612 = vmatpush1.bf16.msra.mxu0 0
  %613 = vmatprep.subr.bf16.mxu0 0
  %614 = vmatpush1.bf16.msra.mxu0 0
  %615 = vmatprep.subr.bf16.mxu0 0
  %616 = vmatpush1.bf16.msra.mxu0 0
  %617 = vmatprep.subr.bf16.mxu0 0
  %618 = vmatpush1.bf16.msra.mxu0 0
  %619 = vmatprep.subr.bf16.mxu0 0
  %620 = vmatpush1.bf16.msra.mxu0 0
  %621 = vmatprep.subr.bf16.mxu0 0
  %622 = vmatpush1.bf16.msra.mxu0 0
  %623 = vmatprep.subr.bf16.mxu0 0
  %624 = vmatpush1.bf16.msra.mxu0 0
  %625 = vmatprep.subr.bf16.mxu0 0
  %626 = vmatpush1.bf16.msra.mxu0 0
  %627 = vmatprep.subr.bf16.mxu0 0
  %628 = vmatpush1.bf16.msra.mxu0 0
  %629 = vmatprep.subr.bf16.mxu0 0
  %630 = vmatpush1.bf16.msra.mxu0 0
  %631 = vmatprep.subr.bf16.mxu0 0
  %632 = vmatpush1.bf16.msra.mxu0 0
  %633 = vmatprep.subr.bf16.mxu0 0
  %634 = vmatpush1.bf16.msra.mxu0 0
  %635 = vmatprep.subr.bf16.mxu0 0
  %636 = vmatpush1.bf16.msra.mxu0 0
  %637 = vmatprep.subr.bf16.mxu0 0
  %638 = vmatpush1.bf16.msra.mxu0 0
  %639 = vmatprep.subr.bf16.mxu0 0
  %640 = vmatpush1.bf16.msra.mxu0 0
  %641 = vmatprep.mubr.bf16.mxu0 0
  %642 = vmatmul.mubr.bf16.gmra.mrb[0].mxu0 %v607
  %v643 = vpop.f32.mrb[0].mxu0
  %v644 = vadd.f32 %v597, %v643
  %v645 = vpop.f32.mrb[0].mxu0
  %v646 = vpop.f32.mrb[0].mxu0
  %v647 = vadd.f32 %v600, %v646
  %v648 = vpop.f32.mrb[0].mxu0
  %649 = vdwg.mxu0
  %v650 = vlaneseq
  %v651 = vshrl.u32 %v650, 7
  %v652 = vsub.s32 5, %v651
  %v653 = vrot.slane %v55, %v652
  %v654 = vadd.f32 %v644, %v653
  %v655 = vadd.f32 %v647, %v653
  %v656 = vadd.f32 %v95, %v654
  %v657 = vadd.f32 %v96, %v655
  %v658 = vsel %vm57, %v656, 0.0
  %659 = vadd.xlane.f32.xlu0 %v658
  %v660 = vpop.xlane.xlu0 %659
  %v661 = vsel %vm57, %v657, 0.0
  %662 = vadd.xlane.f32.xlu0 %v661
  %v663 = vpop.xlane.xlu0 %662
  %v664 = vmul.f32 %v660, %v64
  %v665 = vmul.f32 %v663, %v64
  %v666 = vsub.f32 %v656, %v664
  %v667 = vsub.f32 %v657, %v665
  %v668 = vmul.f32 %v666, %v666
  %v669 = vmul.f32 %v667, %v667
  %v670 = vsel %vm57, %v668, 0.0
  %671 = vadd.xlane.f32.xlu0 %v670
  %v672 = vpop.xlane.xlu0 %671
  %v673 = vsel %vm57, %v669, 0.0
  %674 = vadd.xlane.f32.xlu0 %v673
  %v675 = vpop.xlane.xlu0 %674
  %v676 = vmul.f32 %v672, %v64
  %v677 = vmul.f32 %v675, %v64
  %v678 = vadd.f32 %v676, 1e-08
  %v679 = vadd.f32 %v677, 1e-08
  %v680 = vrsqrt.pop %v678
  %v681 = vrsqrt.pop %v679
  %v682 = vmul.f32 %v666, %v680
  %v683 = vmul.f32 %v667, %v681
  %v684 = vlaneseq
  %v685 = vshrl.u32 %v684, 7
  %v686 = vsub.s32 6, %v685
  %v687 = vrot.slane %v55, %v686
  %v688 = vmul.f32 %v682, %v687
  %v689 = vmul.f32 %v683, %v687
  %v690 = vlaneseq
  %v691 = vshrl.u32 %v690, 7
  %v692 = vsub.s32 7, %v691
  %v693 = vrot.slane %v55, %v692
  %v694 = vadd.f32 %v688, %v693
  %v695 = vadd.f32 %v689, %v693
  %v696 = vpack.c.bf16 %v695, %v694
  %v697 = vlaneseq
  %v698 = vshrl.u32 %v697, 7
  %v699 = vsub.s32 0, %v698
  %v700 = vrot.slane %v56, %v699
  %v701 = vunpack.c.h.b16 %v51
  %v702 = vunpack.c.h.b16 %v52
  %v703 = vunpack.c.h.b16 %v53
  %v704 = vunpack.c.h.b16 %v54
  %v705 = vpack.c.b16 %v702, %v701
  %v706 = vpack.c.b16 %v704, %v703
  %v710 = vsel %vm57, %v696, 0
  %712 = vmatprep.subr.bf16.mxu0 0
  %713 = vmatpush1.bf16.msra.mxu0 %v705
  %714 = vmatprep.subr.bf16.mxu0 0
  %715 = vmatpush1.bf16.msra.mxu0 %v706
  %716 = vmatprep.subr.bf16.mxu0 0
  %717 = vmatpush1.bf16.msra.mxu0 0
  %718 = vmatprep.subr.bf16.mxu0 0
  %719 = vmatpush1.bf16.msra.mxu0 0
  %720 = vmatprep.subr.bf16.mxu0 0
  %721 = vmatpush1.bf16.msra.mxu0 0
  %722 = vmatprep.subr.bf16.mxu0 0
  %723 = vmatpush1.bf16.msra.mxu0 0
  %724 = vmatprep.subr.bf16.mxu0 0
  %725 = vmatpush1.bf16.msra.mxu0 0
  %726 = vmatprep.subr.bf16.mxu0 0
  %727 = vmatpush1.bf16.msra.mxu0 0
  %728 = vmatprep.subr.bf16.mxu0 0
  %729 = vmatpush1.bf16.msra.mxu0 0
  %730 = vmatprep.subr.bf16.mxu0 0
  %731 = vmatpush1.bf16.msra.mxu0 0
  %732 = vmatprep.subr.bf16.mxu0 0
  %733 = vmatpush1.bf16.msra.mxu0 0
  %734 = vmatprep.subr.bf16.mxu0 0
  %735 = vmatpush1.bf16.msra.mxu0 0
  %736 = vmatprep.subr.bf16.mxu0 0
  %737 = vmatpush1.bf16.msra.mxu0 0
  %738 = vmatprep.subr.bf16.mxu0 0
  %739 = vmatpush1.bf16.msra.mxu0 0
  %740 = vmatprep.subr.bf16.mxu0 0
  %741 = vmatpush1.bf16.msra.mxu0 0
  %742 = vmatprep.subr.bf16.mxu0 0
  %743 = vmatpush1.bf16.msra.mxu0 0
  %744 = vmatprep.mubr.bf16.mxu0 0
  %745 = vmatmul.mubr.bf16.gmra.mrb[0].mxu0 %v710
  %v746 = vpop.f32.mrb[0].mxu0
  %v747 = vadd.f32 %v700, %v746
  %v748 = vpop.f32.mrb[0].mxu0
  %v749 = vpop.f32.mrb[0].mxu0
  %v750 = vadd.f32 %v700, %v749
  %v751 = vpop.f32.mrb[0].mxu0
  %752 = vdwg.mxu0
  %v753 = vmax.f32 %v747, 0.0
  %v754 = vmax.f32 %v750, 0.0
  %v755 = vpack.c.bf16 %v754, %v753
  %v756 = vlaneseq
  %v757 = vshrl.u32 %v756, 7
  %v758 = vsub.s32 1, %v757
  %v759 = vrot.slane %v56, %v758
  %760 = vrot.lane.b32.xlu0 %v705, 96
  %v761 = vpop.permute.xlu0 %760
  %762 = vrot.lane.b32.xlu0 %v706, 96
  %v763 = vpop.permute.xlu0 %762
  %v767 = vsel %vm57, %v755, 0
  %769 = vmatprep.subr.bf16.mxu0 0
  %770 = vmatpush1.bf16.msra.mxu0 %v761
  %771 = vmatprep.subr.bf16.mxu0 0
  %772 = vmatpush1.bf16.msra.mxu0 %v763
  %773 = vmatprep.subr.bf16.mxu0 0
  %774 = vmatpush1.bf16.msra.mxu0 0
  %775 = vmatprep.subr.bf16.mxu0 0
  %776 = vmatpush1.bf16.msra.mxu0 0
  %777 = vmatprep.subr.bf16.mxu0 0
  %778 = vmatpush1.bf16.msra.mxu0 0
  %779 = vmatprep.subr.bf16.mxu0 0
  %780 = vmatpush1.bf16.msra.mxu0 0
  %781 = vmatprep.subr.bf16.mxu0 0
  %782 = vmatpush1.bf16.msra.mxu0 0
  %783 = vmatprep.subr.bf16.mxu0 0
  %784 = vmatpush1.bf16.msra.mxu0 0
  %785 = vmatprep.subr.bf16.mxu0 0
  %786 = vmatpush1.bf16.msra.mxu0 0
  %787 = vmatprep.subr.bf16.mxu0 0
  %788 = vmatpush1.bf16.msra.mxu0 0
  %789 = vmatprep.subr.bf16.mxu0 0
  %790 = vmatpush1.bf16.msra.mxu0 0
  %791 = vmatprep.subr.bf16.mxu0 0
  %792 = vmatpush1.bf16.msra.mxu0 0
  %793 = vmatprep.subr.bf16.mxu0 0
  %794 = vmatpush1.bf16.msra.mxu0 0
  %795 = vmatprep.subr.bf16.mxu0 0
  %796 = vmatpush1.bf16.msra.mxu0 0
  %797 = vmatprep.subr.bf16.mxu0 0
  %798 = vmatpush1.bf16.msra.mxu0 0
  %799 = vmatprep.subr.bf16.mxu0 0
  %800 = vmatpush1.bf16.msra.mxu0 0
  %801 = vmatprep.mubr.bf16.mxu0 0
  %802 = vmatmul.mubr.bf16.gmra.mrb[0].mxu0 %v767
  %v803 = vpop.f32.mrb[0].mxu0
  %v804 = vadd.f32 %v759, %v803
  %v805 = vpop.f32.mrb[0].mxu0
  %v806 = vpop.f32.mrb[0].mxu0
  %v807 = vadd.f32 %v759, %v806
  %v808 = vpop.f32.mrb[0].mxu0
  %809 = vdwg.mxu0
  %v810 = vadd.f32 %v694, %v804
  %v811 = vadd.f32 %v695, %v807
  %813 = vset.pattern.permute.xlu0 0
  %814 = vperm.xlu0 %813, %v47
  %v815 = vpop.permute.xlu0 %814
  %818 = vset.pattern.permute.xlu0 0
  %819 = vperm.xlu0 %818, %v48
  %v820 = vpop.permute.xlu0 %819
  %v822 = vmul.f32 %v810, %v815
  %v823 = vmul.f32 %v811, %v820
  %s824 = scalar_lea.vmem %s2, 32
  %v825 = vld [vmem:[%s824] sm:$0xff]
  %v826 = vld [vmem:[%s824 + $0x8] sm:$0xff]
  %v827 = vld [vmem:[%s824 + $0x10] sm:$0xff]
  %v828 = vld [vmem:[%s824 + $0x18] sm:$0xff]
  %s829 = scalar_lea.vmem %s3, 16
  %v830 = vld [vmem:[%s829] sm:$0xff]
  %v831 = vld [vmem:[%s829 + $0x8] sm:$0x3]
  %v832 = vsel %vm57, %v822, 0.0
  %833 = vadd.xlane.f32.xlu0 %v832
  %v834 = vpop.xlane.xlu0 %833
  %v835 = vsel %vm57, %v823, 0.0
  %836 = vadd.xlane.f32.xlu0 %v835
  %v837 = vpop.xlane.xlu0 %836
  %v838 = vmul.f32 %v834, %v64
  %v839 = vmul.f32 %v837, %v64
  %v840 = vsub.f32 %v822, %v838
  %v841 = vsub.f32 %v823, %v839
  %v842 = vmul.f32 %v840, %v840
  %v843 = vmul.f32 %v841, %v841
  %v844 = vsel %vm57, %v842, 0.0
  %845 = vadd.xlane.f32.xlu0 %v844
  %v846 = vpop.xlane.xlu0 %845
  %v847 = vsel %vm57, %v843, 0.0
  %848 = vadd.xlane.f32.xlu0 %v847
  %v849 = vpop.xlane.xlu0 %848
  %v850 = vmul.f32 %v846, %v64
  %v851 = vmul.f32 %v849, %v64
  %v852 = vadd.f32 %v850, 1e-08
  %v853 = vadd.f32 %v851, 1e-08
  %v854 = vrsqrt.pop %v852
  %v855 = vrsqrt.pop %v853
  %v856 = vmul.f32 %v840, %v854
  %v857 = vmul.f32 %v841, %v855
  %v858 = vlaneseq
  %v859 = vshrl.u32 %v858, 7
  %v860 = vsub.s32 0, %v859
  %v861 = vrot.slane %v830, %v860
  %v862 = vmul.f32 %v856, %v861
  %v863 = vmul.f32 %v857, %v861
  %v864 = vlaneseq
  %v865 = vshrl.u32 %v864, 7
  %v866 = vsub.s32 1, %v865
  %v867 = vrot.slane %v830, %v866
  %v868 = vadd.f32 %v862, %v867
  %v869 = vadd.f32 %v863, %v867
  %v870 = vpack.c.bf16 %v869, %v868
  %v871 = vpack.c.bf16 %v823, %v822
  %v872 = vlaneseq
  %v873 = vshrl.u32 %v872, 7
  %v874 = vsub.s32 2, %v873
  %v875 = vrot.slane %v830, %v874
  %v880 = vunpack.c.l.b16 %v825
  %v881 = vunpack.c.l.b16 %v826
  %v882 = vunpack.c.l.b16 %v827
  %v883 = vunpack.c.l.b16 %v828
  %v884 = vpack.c.b16 %v881, %v880
  %v885 = vpack.c.b16 %v883, %v882
  %v889 = vsel %vm57, %v870, 0
  %891 = vmatprep.subr.bf16.mxu0 0
  %892 = vmatpush1.bf16.msra.mxu0 %v884
  %893 = vmatprep.subr.bf16.mxu0 0
  %894 = vmatpush1.bf16.msra.mxu0 %v885
  %895 = vmatprep.subr.bf16.mxu0 0
  %896 = vmatpush1.bf16.msra.mxu0 0
  %897 = vmatprep.subr.bf16.mxu0 0
  %898 = vmatpush1.bf16.msra.mxu0 0
  %899 = vmatprep.subr.bf16.mxu0 0
  %900 = vmatpush1.bf16.msra.mxu0 0
  %901 = vmatprep.subr.bf16.mxu0 0
  %902 = vmatpush1.bf16.msra.mxu0 0
  %903 = vmatprep.subr.bf16.mxu0 0
  %904 = vmatpush1.bf16.msra.mxu0 0
  %905 = vmatprep.subr.bf16.mxu0 0
  %906 = vmatpush1.bf16.msra.mxu0 0
  %907 = vmatprep.subr.bf16.mxu0 0
  %908 = vmatpush1.bf16.msra.mxu0 0
  %909 = vmatprep.subr.bf16.mxu0 0
  %910 = vmatpush1.bf16.msra.mxu0 0
  %911 = vmatprep.subr.bf16.mxu0 0
  %912 = vmatpush1.bf16.msra.mxu0 0
  %913 = vmatprep.subr.bf16.mxu0 0
  %914 = vmatpush1.bf16.msra.mxu0 0
  %915 = vmatprep.subr.bf16.mxu0 0
  %916 = vmatpush1.bf16.msra.mxu0 0
  %917 = vmatprep.subr.bf16.mxu0 0
  %918 = vmatpush1.bf16.msra.mxu0 0
  %919 = vmatprep.subr.bf16.mxu0 0
  %920 = vmatpush1.bf16.msra.mxu0 0
  %921 = vmatprep.subr.bf16.mxu0 0
  %922 = vmatpush1.bf16.msra.mxu0 0
  %923 = vmatprep.mubr.bf16.mxu0 0
  %924 = vmatmul.mubr.bf16.gmra.mrb[0].mxu0 %v889
  %v925 = vpop.f32.mrb[0].mxu0
  %v926 = vadd.f32 %v875, %v925
  %v927 = vpop.f32.mrb[0].mxu0
  %v928 = vpop.f32.mrb[0].mxu0
  %v929 = vadd.f32 %v875, %v928
  %v930 = vpop.f32.mrb[0].mxu0
  %931 = vdwg.mxu0
  %932 = vrot.lane.b32.xlu0 %v884, 96
  %v933 = vpop.permute.xlu0 %932
  %934 = vrot.lane.b32.xlu0 %v885, 96
  %v935 = vpop.permute.xlu0 %934
  %v939 = vsel %vm57, %v871, 0
  %941 = vmatprep.subr.bf16.mxu0 0
  %942 = vmatpush1.bf16.msra.mxu0 %v933
  %943 = vmatprep.subr.bf16.mxu0 0
  %944 = vmatpush1.bf16.msra.mxu0 %v935
  %945 = vmatprep.subr.bf16.mxu0 0
  %946 = vmatpush1.bf16.msra.mxu0 0
  %947 = vmatprep.subr.bf16.mxu0 0
  %948 = vmatpush1.bf16.msra.mxu0 0
  %949 = vmatprep.subr.bf16.mxu0 0
  %950 = vmatpush1.bf16.msra.mxu0 0
  %951 = vmatprep.subr.bf16.mxu0 0
  %952 = vmatpush1.bf16.msra.mxu0 0
  %953 = vmatprep.subr.bf16.mxu0 0
  %954 = vmatpush1.bf16.msra.mxu0 0
  %955 = vmatprep.subr.bf16.mxu0 0
  %956 = vmatpush1.bf16.msra.mxu0 0
  %957 = vmatprep.subr.bf16.mxu0 0
  %958 = vmatpush1.bf16.msra.mxu0 0
  %959 = vmatprep.subr.bf16.mxu0 0
  %960 = vmatpush1.bf16.msra.mxu0 0
  %961 = vmatprep.subr.bf16.mxu0 0
  %962 = vmatpush1.bf16.msra.mxu0 0
  %963 = vmatprep.subr.bf16.mxu0 0
  %964 = vmatpush1.bf16.msra.mxu0 0
  %965 = vmatprep.subr.bf16.mxu0 0
  %966 = vmatpush1.bf16.msra.mxu0 0
  %967 = vmatprep.subr.bf16.mxu0 0
  %968 = vmatpush1.bf16.msra.mxu0 0
  %969 = vmatprep.subr.bf16.mxu0 0
  %970 = vmatpush1.bf16.msra.mxu0 0
  %971 = vmatprep.subr.bf16.mxu0 0
  %972 = vmatpush1.bf16.msra.mxu0 0
  %973 = vmatprep.mubr.bf16.mxu0 0
  %974 = vmatmul.mubr.bf16.gmra.mrb[0].mxu0 %v939
  %v975 = vpop.f32.mrb[0].mxu0
  %v976 = vadd.f32 0.0, %v975
  %v977 = vpop.f32.mrb[0].mxu0
  %v978 = vpop.f32.mrb[0].mxu0
  %v979 = vadd.f32 0.0, %v978
  %v980 = vpop.f32.mrb[0].mxu0
  %981 = vdwg.mxu0
  %v982 = vlaneseq
  %v983 = vshrl.u32 %v982, 7
  %v984 = vsub.s32 3, %v983
  %v985 = vrot.slane %v830, %v984
  %v986 = vadd.f32 %v976, %v985
  %v987 = vadd.f32 %v979, %v985
  %v988 = vlaneseq
  %v989 = vshrl.u32 %v988, 7
  %v990 = vsub.s32 4, %v989
  %v991 = vrot.slane %v830, %v990
  %993 = vrot.lane.b32.xlu0 %v991, 32
  %v994 = vpop.permute.xlu0 %993
  %v996 = vadd.f32 %v976, %v994
  %v997 = vadd.f32 %v979, %v994
  %v999 = vsel %vm225, %v926, 0
  %v1002 = vsel %vm225, %v929, 0
  %v1005 = vsel %vm225, %v986, 0
  %v1008 = vsel %vm225, %v987, 0
  %1010 = vmatprep.subr.mxu0 0.0
  %1011 = vmatpush1.xpose.msra.mxu0 %v1005
  %1012 = vmatprep.subr.mxu0 0.0
  %1013 = vmatpush1.xpose.msra.mxu0 %v1008
  %1014 = vmatprep.subr.mxu0 0.0
  %1015 = vmatpush1.xpose.msra.mxu0 0.0
  %1016 = vmatprep.subr.mxu0 0.0
  %1017 = vmatpush1.xpose.msra.mxu0 0.0
  %1018 = vmatprep.subr.mxu0 0.0
  %1019 = vmatpush1.xpose.msra.mxu0 0.0
  %1020 = vmatprep.subr.mxu0 0.0
  %1021 = vmatpush1.xpose.msra.mxu0 0.0
  %1022 = vmatprep.subr.mxu0 0.0
  %1023 = vmatpush1.xpose.msra.mxu0 0.0
  %1024 = vmatprep.subr.mxu0 0.0
  %1025 = vmatpush1.xpose.msra.mxu0 0.0
  %1026 = vmatprep.subr.mxu0 0.0
  %1027 = vmatpush1.xpose.msra.mxu0 0.0
  %1028 = vmatprep.subr.mxu0 0.0
  %1029 = vmatpush1.xpose.msra.mxu0 0.0
  %1030 = vmatprep.subr.mxu0 0.0
  %1031 = vmatpush1.xpose.msra.mxu0 0.0
  %1032 = vmatprep.subr.mxu0 0.0
  %1033 = vmatpush1.xpose.msra.mxu0 0.0
  %1034 = vmatprep.subr.mxu0 0.0
  %1035 = vmatpush1.xpose.msra.mxu0 0.0
  %1036 = vmatprep.subr.mxu0 0.0
  %1037 = vmatpush1.xpose.msra.mxu0 0.0
  %1038 = vmatprep.subr.mxu0 0.0
  %1039 = vmatpush1.xpose.msra.mxu0 0.0
  %1040 = vmatprep.subr.mxu0 0.0
  %1041 = vmatpush1.xpose.msra.mxu0 0.0
  %1042 = vmatprep.subr.mxu0 0.0
  %1043 = vmatpush1.xpose.msra.mxu0 0.0
  %1044 = vmatprep.subr.mxu0 0.0
  %1045 = vmatpush1.xpose.msra.mxu0 0.0
  %1046 = vmatprep.subr.mxu0 0.0
  %1047 = vmatpush1.xpose.msra.mxu0 0.0
  %1048 = vmatprep.subr.mxu0 0.0
  %1049 = vmatpush1.xpose.msra.mxu0 0.0
  %1050 = vmatprep.subr.mxu0 0.0
  %1051 = vmatpush1.xpose.msra.mxu0 0.0
  %1052 = vmatprep.subr.mxu0 0.0
  %1053 = vmatpush1.xpose.msra.mxu0 0.0
  %1054 = vmatprep.subr.mxu0 0.0
  %1055 = vmatpush1.xpose.msra.mxu0 0.0
  %1056 = vmatprep.subr.mxu0 0.0
  %1057 = vmatpush1.xpose.msra.mxu0 0.0
  %1058 = vmatprep.subr.mxu0 0.0
  %1059 = vmatpush1.xpose.msra.mxu0 0.0
  %1060 = vmatprep.subr.mxu0 0.0
  %1061 = vmatpush1.xpose.msra.mxu0 0.0
  %1062 = vmatprep.subr.mxu0 0.0
  %1063 = vmatpush1.xpose.msra.mxu0 0.0
  %1064 = vmatprep.subr.mxu0 0.0
  %1065 = vmatpush1.xpose.msra.mxu0 0.0
  %1066 = vmatprep.subr.mxu0 0.0
  %1067 = vmatpush1.xpose.msra.mxu0 0.0
  %1068 = vmatprep.subr.mxu0 0.0
  %1069 = vmatpush1.xpose.msra.mxu0 0.0
  %1070 = vmatprep.subr.mxu0 0.0
  %1071 = vmatpush1.xpose.msra.mxu0 0.0
  %1072 = vmatprep.subr.mxu0 0.0
  %1073 = vmatpush1.xpose.msra.mxu0 0.0
  %1074 = vmatprep.mubr.f32.mxu0 0.0
  %1075 = vmatmul.mubr.f32.gmra.mrb[0].mxu0 %v999
  %v1076 = vpop.f32.mrb[0].mxu0
  %v1077 = vadd.f32 0.0, %v1076
  %v1078 = vpop.f32.mrb[0].mxu0
  %1079 = vmatprep.mubr.f32.mxu0 0.0
  %1080 = vmatmul.mubr.f32.gmra.mrb[0].mxu0 %v1002
  %v1081 = vpop.f32.mrb[0].mxu0
  %v1082 = vadd.f32 0.0, %v1081
  %v1083 = vpop.f32.mrb[0].mxu0
  %1084 = vdwg.mxu0
  %v1085 = vmul.f32 %v1077, 0.25
  %v1086 = vmul.f32 %v1082, 0.25
  %v1087 = vadd.f32 %v1085, %v49
  %v1088 = vadd.f32 %v1086, %v50
  %v1089 = vsel %vm225, %v1087, -inf
  %1090 = vmax.xlane.f32.xlu0 %v1089
  %v1091 = vpop.xlane.xlu0 %1090
  %v1092 = vsel %vm225, %v1088, -inf
  %1093 = vmax.xlane.f32.xlu0 %v1092
  %v1094 = vpop.xlane.xlu0 %1093
  %v1095 = vsub.f32 %v1087, %v1091
  %v1096 = vsub.f32 %v1088, %v1094
  %v1097 = vmul.f32 %v1095, 1.442695
  %v1098 = vpow.pop %v1097
  %v1099 = vmul.f32 %v1096, 1.442695
  %v1100 = vpow.pop %v1099
  %v1101 = vsel %vm225, %v1098, 0.0
  %1102 = vadd.xlane.f32.xlu0 %v1101
  %v1103 = vpop.xlane.xlu0 %1102
  %v1104 = vsel %vm225, %v1100, 0.0
  %1105 = vadd.xlane.f32.xlu0 %v1104
  %v1106 = vpop.xlane.xlu0 %1105
  %v1107 = vrcp.pop %v1103
  %v1108 = vrcp.pop %v1106
  %v1109 = vmul.f32 %v1098, %v1107
  %v1110 = vmul.f32 %v1100, %v1108
  %v1111 = vpack.c.bf16 %v1110, %v1109
  %v1112 = vpack.c.bf16 %v997, %v996
  %1114 = vrot.lane.b32.xlu0 %v1112, 96
  %v1115 = vpop.permute.xlu0 %1114
  %v1118 = vsel %vm225, %v1111, 0
  %1120 = vmatprep.subr.bf16.mxu0 0
  %1121 = vmatpush1.bf16.msra.mxu0 %v1115
  %1122 = vmatprep.subr.bf16.mxu0 0
  %1123 = vmatpush1.bf16.msra.mxu0 0
  %1124 = vmatprep.subr.bf16.mxu0 0
  %1125 = vmatpush1.bf16.msra.mxu0 0
  %1126 = vmatprep.subr.bf16.mxu0 0
  %1127 = vmatpush1.bf16.msra.mxu0 0
  %1128 = vmatprep.subr.bf16.mxu0 0
  %1129 = vmatpush1.bf16.msra.mxu0 0
  %1130 = vmatprep.subr.bf16.mxu0 0
  %1131 = vmatpush1.bf16.msra.mxu0 0
  %1132 = vmatprep.subr.bf16.mxu0 0
  %1133 = vmatpush1.bf16.msra.mxu0 0
  %1134 = vmatprep.subr.bf16.mxu0 0
  %1135 = vmatpush1.bf16.msra.mxu0 0
  %1136 = vmatprep.subr.bf16.mxu0 0
  %1137 = vmatpush1.bf16.msra.mxu0 0
  %1138 = vmatprep.subr.bf16.mxu0 0
  %1139 = vmatpush1.bf16.msra.mxu0 0
  %1140 = vmatprep.subr.bf16.mxu0 0
  %1141 = vmatpush1.bf16.msra.mxu0 0
  %1142 = vmatprep.subr.bf16.mxu0 0
  %1143 = vmatpush1.bf16.msra.mxu0 0
  %1144 = vmatprep.subr.bf16.mxu0 0
  %1145 = vmatpush1.bf16.msra.mxu0 0
  %1146 = vmatprep.subr.bf16.mxu0 0
  %1147 = vmatpush1.bf16.msra.mxu0 0
  %1148 = vmatprep.subr.bf16.mxu0 0
  %1149 = vmatpush1.bf16.msra.mxu0 0
  %1150 = vmatprep.subr.bf16.mxu0 0
  %1151 = vmatpush1.bf16.msra.mxu0 0
  %1152 = vmatprep.mubr.bf16.mxu0 0
  %1153 = vmatmul.mubr.bf16.gmra.mrb[0].mxu0 %v1118
  %v1154 = vpop.f32.mrb[0].mxu0
  %v1155 = vadd.f32 0.0, %v1154
  %v1156 = vpop.f32.mrb[0].mxu0
  %v1157 = vpop.f32.mrb[0].mxu0
  %v1158 = vadd.f32 0.0, %v1157
  %v1159 = vpop.f32.mrb[0].mxu0
  %1160 = vdwg.mxu0
  %v1161 = vpack.c.bf16 %v1158, %v1155
  %1162 = vrot.lane.b32.xlu0 %v926, 112
  %v1163 = vpop.permute.xlu0 %1162
  %1164 = vrot.lane.b32.xlu0 %v929, 112
  %v1165 = vpop.permute.xlu0 %1164
  %1166 = vrot.lane.b32.xlu0 %v986, 112
  %v1167 = vpop.permute.xlu0 %1166
  %1168 = vrot.lane.b32.xlu0 %v987, 112
  %v1169 = vpop.permute.xlu0 %1168
  %v1170 = vsel %vm225, %v1163, 0
  %v1172 = vsel %vm225, %v1165, 0
  %v1174 = vsel %vm225, %v1167, 0
  %v1176 = vsel %vm225, %v1169, 0
  %1178 = vmatprep.subr.mxu0 0.0
  %1179 = vmatpush1.xpose.msra.mxu0 %v1174
  %1180 = vmatprep.subr.mxu0 0.0
  %1181 = vmatpush1.xpose.msra.mxu0 %v1176
  %1182 = vmatprep.subr.mxu0 0.0
  %1183 = vmatpush1.xpose.msra.mxu0 0.0
  %1184 = vmatprep.subr.mxu0 0.0
  %1185 = vmatpush1.xpose.msra.mxu0 0.0
  %1186 = vmatprep.subr.mxu0 0.0
  %1187 = vmatpush1.xpose.msra.mxu0 0.0
  %1188 = vmatprep.subr.mxu0 0.0
  %1189 = vmatpush1.xpose.msra.mxu0 0.0
  %1190 = vmatprep.subr.mxu0 0.0
  %1191 = vmatpush1.xpose.msra.mxu0 0.0
  %1192 = vmatprep.subr.mxu0 0.0
  %1193 = vmatpush1.xpose.msra.mxu0 0.0
  %1194 = vmatprep.subr.mxu0 0.0
  %1195 = vmatpush1.xpose.msra.mxu0 0.0
  %1196 = vmatprep.subr.mxu0 0.0
  %1197 = vmatpush1.xpose.msra.mxu0 0.0
  %1198 = vmatprep.subr.mxu0 0.0
  %1199 = vmatpush1.xpose.msra.mxu0 0.0
  %1200 = vmatprep.subr.mxu0 0.0
  %1201 = vmatpush1.xpose.msra.mxu0 0.0
  %1202 = vmatprep.subr.mxu0 0.0
  %1203 = vmatpush1.xpose.msra.mxu0 0.0
  %1204 = vmatprep.subr.mxu0 0.0
  %1205 = vmatpush1.xpose.msra.mxu0 0.0
  %1206 = vmatprep.subr.mxu0 0.0
  %1207 = vmatpush1.xpose.msra.mxu0 0.0
  %1208 = vmatprep.subr.mxu0 0.0
  %1209 = vmatpush1.xpose.msra.mxu0 0.0
  %1210 = vmatprep.subr.mxu0 0.0
  %1211 = vmatpush1.xpose.msra.mxu0 0.0
  %1212 = vmatprep.subr.mxu0 0.0
  %1213 = vmatpush1.xpose.msra.mxu0 0.0
  %1214 = vmatprep.subr.mxu0 0.0
  %1215 = vmatpush1.xpose.msra.mxu0 0.0
  %1216 = vmatprep.subr.mxu0 0.0
  %1217 = vmatpush1.xpose.msra.mxu0 0.0
  %1218 = vmatprep.subr.mxu0 0.0
  %1219 = vmatpush1.xpose.msra.mxu0 0.0
  %1220 = vmatprep.subr.mxu0 0.0
  %1221 = vmatpush1.xpose.msra.mxu0 0.0
  %1222 = vmatprep.subr.mxu0 0.0
  %1223 = vmatpush1.xpose.msra.mxu0 0.0
  %1224 = vmatprep.subr.mxu0 0.0
  %1225 = vmatpush1.xpose.msra.mxu0 0.0
  %1226 = vmatprep.subr.mxu0 0.0
  %1227 = vmatpush1.xpose.msra.mxu0 0.0
  %1228 = vmatprep.subr.mxu0 0.0
  %1229 = vmatpush1.xpose.msra.mxu0 0.0
  %1230 = vmatprep.subr.mxu0 0.0
  %1231 = vmatpush1.xpose.msra.mxu0 0.0
  %1232 = vmatprep.subr.mxu0 0.0
  %1233 = vmatpush1.xpose.msra.mxu0 0.0
  %1234 = vmatprep.subr.mxu0 0.0
  %1235 = vmatpush1.xpose.msra.mxu0 0.0
  %1236 = vmatprep.subr.mxu0 0.0
  %1237 = vmatpush1.xpose.msra.mxu0 0.0
  %1238 = vmatprep.subr.mxu0 0.0
  %1239 = vmatpush1.xpose.msra.mxu0 0.0
  %1240 = vmatprep.subr.mxu0 0.0
  %1241 = vmatpush1.xpose.msra.mxu0 0.0
  %1242 = vmatprep.mubr.f32.mxu0 0.0
  %1243 = vmatmul.mubr.f32.gmra.mrb[0].mxu0 %v1170
  %v1244 = vpop.f32.mrb[0].mxu0
  %v1245 = vadd.f32 0.0, %v1244
  %v1246 = vpop.f32.mrb[0].mxu0
  %1247 = vmatprep.mubr.f32.mxu0 0.0
  %1248 = vmatmul.mubr.f32.gmra.mrb[0].mxu0 %v1172
  %v1249 = vpop.f32.mrb[0].mxu0
  %v1250 = vadd.f32 0.0, %v1249
  %v1251 = vpop.f32.mrb[0].mxu0
  %1252 = vdwg.mxu0
  %v1253 = vmul.f32 %v1245, 0.25
  %v1254 = vmul.f32 %v1250, 0.25
  %v1255 = vadd.f32 %v1253, %v49
  %v1256 = vadd.f32 %v1254, %v50
  %v1257 = vsel %vm225, %v1255, -inf
  %1258 = vmax.xlane.f32.xlu0 %v1257
  %v1259 = vpop.xlane.xlu0 %1258
  %v1260 = vsel %vm225, %v1256, -inf
  %1261 = vmax.xlane.f32.xlu0 %v1260
  %v1262 = vpop.xlane.xlu0 %1261
  %v1263 = vsub.f32 %v1255, %v1259
  %v1264 = vsub.f32 %v1256, %v1262
  %v1265 = vmul.f32 %v1263, 1.442695
  %v1266 = vpow.pop %v1265
  %v1267 = vmul.f32 %v1264, 1.442695
  %v1268 = vpow.pop %v1267
  %v1269 = vsel %vm225, %v1266, 0.0
  %1270 = vadd.xlane.f32.xlu0 %v1269
  %v1271 = vpop.xlane.xlu0 %1270
  %v1272 = vsel %vm225, %v1268, 0.0
  %1273 = vadd.xlane.f32.xlu0 %v1272
  %v1274 = vpop.xlane.xlu0 %1273
  %v1275 = vrcp.pop %v1271
  %v1276 = vrcp.pop %v1274
  %v1277 = vmul.f32 %v1266, %v1275
  %v1278 = vmul.f32 %v1268, %v1276
  %v1279 = vpack.c.bf16 %v1278, %v1277
  %1280 = vrot.lane.b32.xlu0 %v1112, 80
  %v1281 = vpop.permute.xlu0 %1280
  %v1284 = vsel %vm225, %v1279, 0
  %1286 = vmatprep.subr.bf16.mxu0 0
  %1287 = vmatpush1.bf16.msra.mxu0 %v1281
  %1288 = vmatprep.subr.bf16.mxu0 0
  %1289 = vmatpush1.bf16.msra.mxu0 0
  %1290 = vmatprep.subr.bf16.mxu0 0
  %1291 = vmatpush1.bf16.msra.mxu0 0
  %1292 = vmatprep.subr.bf16.mxu0 0
  %1293 = vmatpush1.bf16.msra.mxu0 0
  %1294 = vmatprep.subr.bf16.mxu0 0
  %1295 = vmatpush1.bf16.msra.mxu0 0
  %1296 = vmatprep.subr.bf16.mxu0 0
  %1297 = vmatpush1.bf16.msra.mxu0 0
  %1298 = vmatprep.subr.bf16.mxu0 0
  %1299 = vmatpush1.bf16.msra.mxu0 0
  %1300 = vmatprep.subr.bf16.mxu0 0
  %1301 = vmatpush1.bf16.msra.mxu0 0
  %1302 = vmatprep.subr.bf16.mxu0 0
  %1303 = vmatpush1.bf16.msra.mxu0 0
  %1304 = vmatprep.subr.bf16.mxu0 0
  %1305 = vmatpush1.bf16.msra.mxu0 0
  %1306 = vmatprep.subr.bf16.mxu0 0
  %1307 = vmatpush1.bf16.msra.mxu0 0
  %1308 = vmatprep.subr.bf16.mxu0 0
  %1309 = vmatpush1.bf16.msra.mxu0 0
  %1310 = vmatprep.subr.bf16.mxu0 0
  %1311 = vmatpush1.bf16.msra.mxu0 0
  %1312 = vmatprep.subr.bf16.mxu0 0
  %1313 = vmatpush1.bf16.msra.mxu0 0
  %1314 = vmatprep.subr.bf16.mxu0 0
  %1315 = vmatpush1.bf16.msra.mxu0 0
  %1316 = vmatprep.subr.bf16.mxu0 0
  %1317 = vmatpush1.bf16.msra.mxu0 0
  %1318 = vmatprep.mubr.bf16.mxu0 0
  %1319 = vmatmul.mubr.bf16.gmra.mrb[0].mxu0 %v1284
  %v1320 = vpop.f32.mrb[0].mxu0
  %v1321 = vadd.f32 0.0, %v1320
  %v1322 = vpop.f32.mrb[0].mxu0
  %v1323 = vpop.f32.mrb[0].mxu0
  %v1324 = vadd.f32 0.0, %v1323
  %v1325 = vpop.f32.mrb[0].mxu0
  %1326 = vdwg.mxu0
  %v1327 = vpack.c.bf16 %v1324, %v1321
  %1328 = vrot.lane.b32.xlu0 %v885, 32
  %v1329 = vpop.permute.xlu0 %1328
  %v1332 = vsel %vm225, %v1327, 0
  %1334 = vmatprep.subr.bf16.mxu0 0
  %1335 = vmatpush1.bf16.msra.mxu0 %v1329
  %1336 = vmatprep.subr.bf16.mxu0 0
  %1337 = vmatpush1.bf16.msra.mxu0 0
  %1338 = vmatprep.subr.bf16.mxu0 0
  %1339 = vmatpush1.bf16.msra.mxu0 0
  %1340 = vmatprep.subr.bf16.mxu0 0
  %1341 = vmatpush1.bf16.msra.mxu0 0
  %1342 = vmatprep.subr.bf16.mxu0 0
  %1343 = vmatpush1.bf16.msra.mxu0 0
  %1344 = vmatprep.subr.bf16.mxu0 0
  %1345 = vmatpush1.bf16.msra.mxu0 0
  %1346 = vmatprep.subr.bf16.mxu0 0
  %1347 = vmatpush1.bf16.msra.mxu0 0
  %1348 = vmatprep.subr.bf16.mxu0 0
  %1349 = vmatpush1.bf16.msra.mxu0 0
  %1350 = vmatprep.subr.bf16.mxu0 0
  %1351 = vmatpush1.bf16.msra.mxu0 0
  %1352 = vmatprep.subr.bf16.mxu0 0
  %1353 = vmatpush1.bf16.msra.mxu0 0
  %1354 = vmatprep.subr.bf16.mxu0 0
  %1355 = vmatpush1.bf16.msra.mxu0 0
  %1356 = vmatprep.subr.bf16.mxu0 0
  %1357 = vmatpush1.bf16.msra.mxu0 0
  %1358 = vmatprep.subr.bf16.mxu0 0
  %1359 = vmatpush1.bf16.msra.mxu0 0
  %1360 = vmatprep.subr.bf16.mxu0 0
  %1361 = vmatpush1.bf16.msra.mxu0 0
  %1362 = vmatprep.subr.bf16.mxu0 0
  %1363 = vmatpush1.bf16.msra.mxu0 0
  %1364 = vmatprep.subr.bf16.mxu0 0
  %1365 = vmatpush1.bf16.msra.mxu0 0
  %1366 = vmatprep.mubr.bf16.mxu0 0
  %1367 = vmatmul.mubr.bf16.gmra.mrb[0].mxu0 %v1332
  %v1368 = vpop.f32.mrb[0].mxu0
  %v1369 = vadd.f32 0.0, %v1368
  %v1370 = vpop.f32.mrb[0].mxu0
  %v1371 = vpop.f32.mrb[0].mxu0
  %v1372 = vadd.f32 0.0, %v1371
  %v1373 = vpop.f32.mrb[0].mxu0
  %1374 = vdwg.mxu0
  %1375 = vrot.lane.b32.xlu0 %v884, 32
  %v1376 = vpop.permute.xlu0 %1375
  %v1379 = vsel %vm225, %v1161, 0
  %1381 = vmatprep.subr.bf16.mxu0 0
  %1382 = vmatpush1.bf16.msra.mxu0 %v1376
  %1383 = vmatprep.subr.bf16.mxu0 0
  %1384 = vmatpush1.bf16.msra.mxu0 0
  %1385 = vmatprep.subr.bf16.mxu0 0
  %1386 = vmatpush1.bf16.msra.mxu0 0
  %1387 = vmatprep.subr.bf16.mxu0 0
  %1388 = vmatpush1.bf16.msra.mxu0 0
  %1389 = vmatprep.subr.bf16.mxu0 0
  %1390 = vmatpush1.bf16.msra.mxu0 0
  %1391 = vmatprep.subr.bf16.mxu0 0
  %1392 = vmatpush1.bf16.msra.mxu0 0
  %1393 = vmatprep.subr.bf16.mxu0 0
  %1394 = vmatpush1.bf16.msra.mxu0 0
  %1395 = vmatprep.subr.bf16.mxu0 0
  %1396 = vmatpush1.bf16.msra.mxu0 0
  %1397 = vmatprep.subr.bf16.mxu0 0
  %1398 = vmatpush1.bf16.msra.mxu0 0
  %1399 = vmatprep.subr.bf16.mxu0 0
  %1400 = vmatpush1.bf16.msra.mxu0 0
  %1401 = vmatprep.subr.bf16.mxu0 0
  %1402 = vmatpush1.bf16.msra.mxu0 0
  %1403 = vmatprep.subr.bf16.mxu0 0
  %1404 = vmatpush1.bf16.msra.mxu0 0
  %1405 = vmatprep.subr.bf16.mxu0 0
  %1406 = vmatpush1.bf16.msra.mxu0 0
  %1407 = vmatprep.subr.bf16.mxu0 0
  %1408 = vmatpush1.bf16.msra.mxu0 0
  %1409 = vmatprep.subr.bf16.mxu0 0
  %1410 = vmatpush1.bf16.msra.mxu0 0
  %1411 = vmatprep.subr.bf16.mxu0 0
  %1412 = vmatpush1.bf16.msra.mxu0 0
  %1413 = vmatprep.mubr.bf16.mxu0 0
  %1414 = vmatmul.mubr.bf16.gmra.mrb[0].mxu0 %v1379
  %v1415 = vpop.f32.mrb[0].mxu0
  %v1416 = vadd.f32 %v1369, %v1415
  %v1417 = vpop.f32.mrb[0].mxu0
  %v1418 = vpop.f32.mrb[0].mxu0
  %v1419 = vadd.f32 %v1372, %v1418
  %v1420 = vpop.f32.mrb[0].mxu0
  %1421 = vdwg.mxu0
  %v1422 = vlaneseq
  %v1423 = vshrl.u32 %v1422, 7
  %v1424 = vsub.s32 5, %v1423
  %v1425 = vrot.slane %v830, %v1424
  %v1426 = vadd.f32 %v1416, %v1425
  %v1427 = vadd.f32 %v1419, %v1425
  %v1428 = vadd.f32 %v868, %v1426
  %v1429 = vadd.f32 %v869, %v1427
  %v1430 = vsel %vm57, %v1428, 0.0
  %1431 = vadd.xlane.f32.xlu0 %v1430
  %v1432 = vpop.xlane.xlu0 %1431
  %v1433 = vsel %vm57, %v1429, 0.0
  %1434 = vadd.xlane.f32.xlu0 %v1433
  %v1435 = vpop.xlane.xlu0 %1434
  %v1436 = vmul.f32 %v1432, %v64
  %v1437 = vmul.f32 %v1435, %v64
  %v1438 = vsub.f32 %v1428, %v1436
  %v1439 = vsub.f32 %v1429, %v1437
  %v1440 = vmul.f32 %v1438, %v1438
  %v1441 = vmul.f32 %v1439, %v1439
  %v1442 = vsel %vm57, %v1440, 0.0
  %1443 = vadd.xlane.f32.xlu0 %v1442
  %v1444 = vpop.xlane.xlu0 %1443
  %v1445 = vsel %vm57, %v1441, 0.0
  %1446 = vadd.xlane.f32.xlu0 %v1445
  %v1447 = vpop.xlane.xlu0 %1446
  %v1448 = vmul.f32 %v1444, %v64
  %v1449 = vmul.f32 %v1447, %v64
  %v1450 = vadd.f32 %v1448, 1e-08
  %v1451 = vadd.f32 %v1449, 1e-08
  %v1452 = vrsqrt.pop %v1450
  %v1453 = vrsqrt.pop %v1451
  %v1454 = vmul.f32 %v1438, %v1452
  %v1455 = vmul.f32 %v1439, %v1453
  %v1456 = vlaneseq
  %v1457 = vshrl.u32 %v1456, 7
  %v1458 = vsub.s32 6, %v1457
  %v1459 = vrot.slane %v830, %v1458
  %v1460 = vmul.f32 %v1454, %v1459
  %v1461 = vmul.f32 %v1455, %v1459
  %v1462 = vlaneseq
  %v1463 = vshrl.u32 %v1462, 7
  %v1464 = vsub.s32 7, %v1463
  %v1465 = vrot.slane %v830, %v1464
  %v1466 = vadd.f32 %v1460, %v1465
  %v1467 = vadd.f32 %v1461, %v1465
  %v1468 = vpack.c.bf16 %v1467, %v1466
  %v1469 = vlaneseq
  %v1470 = vshrl.u32 %v1469, 7
  %v1471 = vsub.s32 0, %v1470
  %v1472 = vrot.slane %v831, %v1471
  %v1473 = vunpack.c.h.b16 %v825
  %v1474 = vunpack.c.h.b16 %v826
  %v1475 = vunpack.c.h.b16 %v827
  %v1476 = vunpack.c.h.b16 %v828
  %v1477 = vpack.c.b16 %v1474, %v1473
  %v1478 = vpack.c.b16 %v1476, %v1475
  %v1482 = vsel %vm57, %v1468, 0
  %1484 = vmatprep.subr.bf16.mxu0 0
  %1485 = vmatpush1.bf16.msra.mxu0 %v1477
  %1486 = vmatprep.subr.bf16.mxu0 0
  %1487 = vmatpush1.bf16.msra.mxu0 %v1478
  %1488 = vmatprep.subr.bf16.mxu0 0
  %1489 = vmatpush1.bf16.msra.mxu0 0
  %1490 = vmatprep.subr.bf16.mxu0 0
  %1491 = vmatpush1.bf16.msra.mxu0 0
  %1492 = vmatprep.subr.bf16.mxu0 0
  %1493 = vmatpush1.bf16.msra.mxu0 0
  %1494 = vmatprep.subr.bf16.mxu0 0
  %1495 = vmatpush1.bf16.msra.mxu0 0
  %1496 = vmatprep.subr.bf16.mxu0 0
  %1497 = vmatpush1.bf16.msra.mxu0 0
  %1498 = vmatprep.subr.bf16.mxu0 0
  %1499 = vmatpush1.bf16.msra.mxu0 0
  %1500 = vmatprep.subr.bf16.mxu0 0
  %1501 = vmatpush1.bf16.msra.mxu0 0
  %1502 = vmatprep.subr.bf16.mxu0 0
  %1503 = vmatpush1.bf16.msra.mxu0 0
  %1504 = vmatprep.subr.bf16.mxu0 0
  %1505 = vmatpush1.bf16.msra.mxu0 0
  %1506 = vmatprep.subr.bf16.mxu0 0
  %1507 = vmatpush1.bf16.msra.mxu0 0
  %1508 = vmatprep.subr.bf16.mxu0 0
  %1509 = vmatpush1.bf16.msra.mxu0 0
  %1510 = vmatprep.subr.bf16.mxu0 0
  %1511 = vmatpush1.bf16.msra.mxu0 0
  %1512 = vmatprep.subr.bf16.mxu0 0
  %1513 = vmatpush1.bf16.msra.mxu0 0
  %1514 = vmatprep.subr.bf16.mxu0 0
  %1515 = vmatpush1.bf16.msra.mxu0 0
  %1516 = vmatprep.mubr.bf16.mxu0 0
  %1517 = vmatmul.mubr.bf16.gmra.mrb[0].mxu0 %v1482
  %v1518 = vpop.f32.mrb[0].mxu0
  %v1519 = vadd.f32 %v1472, %v1518
  %v1520 = vpop.f32.mrb[0].mxu0
  %v1521 = vpop.f32.mrb[0].mxu0
  %v1522 = vadd.f32 %v1472, %v1521
  %v1523 = vpop.f32.mrb[0].mxu0
  %1524 = vdwg.mxu0
  %v1525 = vmax.f32 %v1519, 0.0
  %v1526 = vmax.f32 %v1522, 0.0
  %v1527 = vpack.c.bf16 %v1526, %v1525
  %v1528 = vlaneseq
  %v1529 = vshrl.u32 %v1528, 7
  %v1530 = vsub.s32 1, %v1529
  %v1531 = vrot.slane %v831, %v1530
  %1532 = vrot.lane.b32.xlu0 %v1477, 96
  %v1533 = vpop.permute.xlu0 %1532
  %1534 = vrot.lane.b32.xlu0 %v1478, 96
  %v1535 = vpop.permute.xlu0 %1534
  %v1539 = vsel %vm57, %v1527, 0
  %1541 = vmatprep.subr.bf16.mxu0 0
  %1542 = vmatpush1.bf16.msra.mxu0 %v1533
  %1543 = vmatprep.subr.bf16.mxu0 0
  %1544 = vmatpush1.bf16.msra.mxu0 %v1535
  %1545 = vmatprep.subr.bf16.mxu0 0
  %1546 = vmatpush1.bf16.msra.mxu0 0
  %1547 = vmatprep.subr.bf16.mxu0 0
  %1548 = vmatpush1.bf16.msra.mxu0 0
  %1549 = vmatprep.subr.bf16.mxu0 0
  %1550 = vmatpush1.bf16.msra.mxu0 0
  %1551 = vmatprep.subr.bf16.mxu0 0
  %1552 = vmatpush1.bf16.msra.mxu0 0
  %1553 = vmatprep.subr.bf16.mxu0 0
  %1554 = vmatpush1.bf16.msra.mxu0 0
  %1555 = vmatprep.subr.bf16.mxu0 0
  %1556 = vmatpush1.bf16.msra.mxu0 0
  %1557 = vmatprep.subr.bf16.mxu0 0
  %1558 = vmatpush1.bf16.msra.mxu0 0
  %1559 = vmatprep.subr.bf16.mxu0 0
  %1560 = vmatpush1.bf16.msra.mxu0 0
  %1561 = vmatprep.subr.bf16.mxu0 0
  %1562 = vmatpush1.bf16.msra.mxu0 0
  %1563 = vmatprep.subr.bf16.mxu0 0
  %1564 = vmatpush1.bf16.msra.mxu0 0
  %1565 = vmatprep.subr.bf16.mxu0 0
  %1566 = vmatpush1.bf16.msra.mxu0 0
  %1567 = vmatprep.subr.bf16.mxu0 0
  %1568 = vmatpush1.bf16.msra.mxu0 0
  %1569 = vmatprep.subr.bf16.mxu0 0
  %1570 = vmatpush1.bf16.msra.mxu0 0
  %1571 = vmatprep.subr.bf16.mxu0 0
  %1572 = vmatpush1.bf16.msra.mxu0 0
  %1573 = vmatprep.mubr.bf16.mxu0 0
  %1574 = vmatmul.mubr.bf16.gmra.mrb[0].mxu0 %v1539
  %v1575 = vpop.f32.mrb[0].mxu0
  %v1576 = vadd.f32 %v1531, %v1575
  %v1577 = vpop.f32.mrb[0].mxu0
  %v1578 = vpop.f32.mrb[0].mxu0
  %v1579 = vadd.f32 %v1531, %v1578
  %v1580 = vpop.f32.mrb[0].mxu0
  %1581 = vdwg.mxu0
  %v1582 = vadd.f32 %v1466, %v1576
  %v1583 = vadd.f32 %v1467, %v1579
  %v1584 = vmul.f32 %v1582, %v815
  %v1585 = vmul.f32 %v1583, %v820
  %v1586 = vld [vmem:[%s5] sm:$0x1]
  %v1587 = vld [vmem:[%s6] sm:$0x1]
  %v1588 = vsel %vm57, %v1584, 0.0
  %1589 = vadd.xlane.f32.xlu0 %v1588
  %v1590 = vpop.xlane.xlu0 %1589
  %v1591 = vsel %vm57, %v1585, 0.0
  %1592 = vadd.xlane.f32.xlu0 %v1591
  %v1593 = vpop.xlane.xlu0 %1592
  %v1594 = vmul.f32 %v1590, %v64
  %v1595 = vmul.f32 %v1593, %v64
  %v1596 = vsub.f32 %v1584, %v1594
  %v1597 = vsub.f32 %v1585, %v1595
  %v1598 = vmul.f32 %v1596, %v1596
  %v1599 = vmul.f32 %v1597, %v1597
  %v1600 = vsel %vm57, %v1598, 0.0
  %1601 = vadd.xlane.f32.xlu0 %v1600
  %v1602 = vpop.xlane.xlu0 %1601
  %v1603 = vsel %vm57, %v1599, 0.0
  %1604 = vadd.xlane.f32.xlu0 %v1603
  %v1605 = vpop.xlane.xlu0 %1604
  %v1606 = vmul.f32 %v1602, %v64
  %v1607 = vmul.f32 %v1605, %v64
  %v1608 = vadd.f32 %v1606, 1e-08
  %v1609 = vadd.f32 %v1607, 1e-08
  %v1610 = vrsqrt.pop %v1608
  %v1611 = vrsqrt.pop %v1609
  %v1612 = vmul.f32 %v1596, %v1610
  %v1613 = vmul.f32 %v1597, %v1611
  %v1615 = vlaneseq
  %v1616 = vshrl.u32 %v1615, 7
  %v1617 = vsub.s32 0, %v1616
  %v1618 = vrot.slane %v1586, %v1617
  %v1620 = vmul.f32 %v1612, %v1618
  %v1621 = vmul.f32 %v1613, %v1618
  %v1623 = vlaneseq
  %v1624 = vshrl.u32 %v1623, 7
  %v1625 = vsub.s32 0, %v1624
  %v1626 = vrot.slane %v1587, %v1625
  %v1628 = vadd.f32 %v1620, %v1626
  %v1629 = vadd.f32 %v1621, %v1626
  %v1630 = vld [vmem:[%s7] sm:$0xff]
  %v1631 = vld [vmem:[%s7 + $0x8] sm:$0xff]
  %v1632 = vmul.f32 %v1628, %v1630
  %v1633 = vmul.f32 %v1629, %v1631
  %v1634 = vsel %vm57, %v1632, 0.0
  %1635 = vadd.xlane.f32.xlu0 %v1634
  %v1636 = vpop.xlane.xlu0 %1635
  %v1637 = vsel %vm57, %v1633, 0.0
  %1638 = vadd.xlane.f32.xlu0 %v1637
  %v1639 = vpop.xlane.xlu0 %1638
  %v1640 = vld [vmem:[%s8] sm:$0xff]
  %v1641 = vld [vmem:[%s8 + $0x8] sm:$0xff]
  %v1642 = vmul.f32 %v1628, %v1640
  %v1643 = vmul.f32 %v1629, %v1641
  %v1644 = vsel %vm57, %v1642, 0.0
  %1645 = vadd.xlane.f32.xlu0 %v1644
  %v1646 = vpop.xlane.xlu0 %1645
  %v1647 = vsel %vm57, %v1643, 0.0
  %1648 = vadd.xlane.f32.xlu0 %v1647
  %v1649 = vpop.xlane.xlu0 %1648
  %v1650 = vld [vmem:[%s9] sm:$0xff]
  %v1651 = vld [vmem:[%s9 + $0x8] sm:$0xff]
  %v1652 = vld [vmem:[%s10] sm:$0xff]
  %v1653 = vld [vmem:[%s10 + $0x8] sm:$0xff]
  %vm1654 = vcmask 64512
  %v1656 = vsel %vm1654, %v1650, 0
  %1658 = vmatprep.subr.mxu0 0.0
  %1659 = vmatpush1.msra.mxu0 %v1652
  %1660 = vmatprep.subr.mxu0 0.0
  %1661 = vmatpush1.msra.mxu0 0.0
  %1662 = vmatprep.subr.mxu0 0.0
  %1663 = vmatpush1.msra.mxu0 0.0
  %1664 = vmatprep.subr.mxu0 0.0
  %1665 = vmatpush1.msra.mxu0 0.0
  %1666 = vmatprep.subr.mxu0 0.0
  %1667 = vmatpush1.msra.mxu0 0.0
  %1668 = vmatprep.subr.mxu0 0.0
  %1669 = vmatpush1.msra.mxu0 0.0
  %1670 = vmatprep.subr.mxu0 0.0
  %1671 = vmatpush1.msra.mxu0 0.0
  %1672 = vmatprep.subr.mxu0 0.0
  %1673 = vmatpush1.msra.mxu0 0.0
  %1674 = vmatprep.subr.mxu0 0.0
  %1675 = vmatpush1.msra.mxu0 0.0
  %1676 = vmatprep.subr.mxu0 0.0
  %1677 = vmatpush1.msra.mxu0 0.0
  %1678 = vmatprep.subr.mxu0 0.0
  %1679 = vmatpush1.msra.mxu0 0.0
  %1680 = vmatprep.subr.mxu0 0.0
  %1681 = vmatpush1.msra.mxu0 0.0
  %1682 = vmatprep.subr.mxu0 0.0
  %1683 = vmatpush1.msra.mxu0 0.0
  %1684 = vmatprep.subr.mxu0 0.0
  %1685 = vmatpush1.msra.mxu0 0.0
  %1686 = vmatprep.subr.mxu0 0.0
  %1687 = vmatpush1.msra.mxu0 0.0
  %1688 = vmatprep.subr.mxu0 0.0
  %1689 = vmatpush1.msra.mxu0 0.0
  %1690 = vmatprep.subr.mxu0 0.0
  %1691 = vmatpush1.msra.mxu0 0.0
  %1692 = vmatprep.subr.mxu0 0.0
  %1693 = vmatpush1.msra.mxu0 0.0
  %1694 = vmatprep.subr.mxu0 0.0
  %1695 = vmatpush1.msra.mxu0 0.0
  %1696 = vmatprep.subr.mxu0 0.0
  %1697 = vmatpush1.msra.mxu0 0.0
  %1698 = vmatprep.subr.mxu0 0.0
  %1699 = vmatpush1.msra.mxu0 0.0
  %1700 = vmatprep.subr.mxu0 0.0
  %1701 = vmatpush1.msra.mxu0 0.0
  %1702 = vmatprep.subr.mxu0 0.0
  %1703 = vmatpush1.msra.mxu0 0.0
  %1704 = vmatprep.subr.mxu0 0.0
  %1705 = vmatpush1.msra.mxu0 0.0
  %1706 = vmatprep.subr.mxu0 0.0
  %1707 = vmatpush1.msra.mxu0 0.0
  %1708 = vmatprep.subr.mxu0 0.0
  %1709 = vmatpush1.msra.mxu0 0.0
  %1710 = vmatprep.subr.mxu0 0.0
  %1711 = vmatpush1.msra.mxu0 0.0
  %1712 = vmatprep.subr.mxu0 0.0
  %1713 = vmatpush1.msra.mxu0 0.0
  %1714 = vmatprep.subr.mxu0 0.0
  %1715 = vmatpush1.msra.mxu0 0.0
  %1716 = vmatprep.subr.mxu0 0.0
  %1717 = vmatpush1.msra.mxu0 0.0
  %1718 = vmatprep.subr.mxu0 0.0
  %1719 = vmatpush1.msra.mxu0 0.0
  %1720 = vmatprep.subr.mxu0 0.0
  %1721 = vmatpush1.msra.mxu0 0.0
  %1722 = vmatprep.mubr.f32.mxu0 0.0
  %1723 = vmatmul.mubr.f32.gmra.mrb[0].mxu0 %v1656
  %v1724 = vpop.f32.mrb[0].mxu0
  %v1725 = vadd.f32 0.0, %v1724
  %v1726 = vpop.f32.mrb[0].mxu0
  %1727 = vdwg.mxu0
  %v1729 = vsel %vm1654, %v1651, 0
  %1731 = vmatprep.subr.mxu0 0.0
  %1732 = vmatpush1.msra.mxu0 %v1653
  %1733 = vmatprep.subr.mxu0 0.0
  %1734 = vmatpush1.msra.mxu0 0.0
  %1735 = vmatprep.subr.mxu0 0.0
  %1736 = vmatpush1.msra.mxu0 0.0
  %1737 = vmatprep.subr.mxu0 0.0
  %1738 = vmatpush1.msra.mxu0 0.0
  %1739 = vmatprep.subr.mxu0 0.0
  %1740 = vmatpush1.msra.mxu0 0.0
  %1741 = vmatprep.subr.mxu0 0.0
  %1742 = vmatpush1.msra.mxu0 0.0
  %1743 = vmatprep.subr.mxu0 0.0
  %1744 = vmatpush1.msra.mxu0 0.0
  %1745 = vmatprep.subr.mxu0 0.0
  %1746 = vmatpush1.msra.mxu0 0.0
  %1747 = vmatprep.subr.mxu0 0.0
  %1748 = vmatpush1.msra.mxu0 0.0
  %1749 = vmatprep.subr.mxu0 0.0
  %1750 = vmatpush1.msra.mxu0 0.0
  %1751 = vmatprep.subr.mxu0 0.0
  %1752 = vmatpush1.msra.mxu0 0.0
  %1753 = vmatprep.subr.mxu0 0.0
  %1754 = vmatpush1.msra.mxu0 0.0
  %1755 = vmatprep.subr.mxu0 0.0
  %1756 = vmatpush1.msra.mxu0 0.0
  %1757 = vmatprep.subr.mxu0 0.0
  %1758 = vmatpush1.msra.mxu0 0.0
  %1759 = vmatprep.subr.mxu0 0.0
  %1760 = vmatpush1.msra.mxu0 0.0
  %1761 = vmatprep.subr.mxu0 0.0
  %1762 = vmatpush1.msra.mxu0 0.0
  %1763 = vmatprep.subr.mxu0 0.0
  %1764 = vmatpush1.msra.mxu0 0.0
  %1765 = vmatprep.subr.mxu0 0.0
  %1766 = vmatpush1.msra.mxu0 0.0
  %1767 = vmatprep.subr.mxu0 0.0
  %1768 = vmatpush1.msra.mxu0 0.0
  %1769 = vmatprep.subr.mxu0 0.0
  %1770 = vmatpush1.msra.mxu0 0.0
  %1771 = vmatprep.subr.mxu0 0.0
  %1772 = vmatpush1.msra.mxu0 0.0
  %1773 = vmatprep.subr.mxu0 0.0
  %1774 = vmatpush1.msra.mxu0 0.0
  %1775 = vmatprep.subr.mxu0 0.0
  %1776 = vmatpush1.msra.mxu0 0.0
  %1777 = vmatprep.subr.mxu0 0.0
  %1778 = vmatpush1.msra.mxu0 0.0
  %1779 = vmatprep.subr.mxu0 0.0
  %1780 = vmatpush1.msra.mxu0 0.0
  %1781 = vmatprep.subr.mxu0 0.0
  %1782 = vmatpush1.msra.mxu0 0.0
  %1783 = vmatprep.subr.mxu0 0.0
  %1784 = vmatpush1.msra.mxu0 0.0
  %1785 = vmatprep.subr.mxu0 0.0
  %1786 = vmatpush1.msra.mxu0 0.0
  %1787 = vmatprep.subr.mxu0 0.0
  %1788 = vmatpush1.msra.mxu0 0.0
  %1789 = vmatprep.subr.mxu0 0.0
  %1790 = vmatpush1.msra.mxu0 0.0
  %1791 = vmatprep.subr.mxu0 0.0
  %1792 = vmatpush1.msra.mxu0 0.0
  %1793 = vmatprep.subr.mxu0 0.0
  %1794 = vmatpush1.msra.mxu0 0.0
  %1795 = vmatprep.mubr.f32.mxu0 0.0
  %1796 = vmatmul.mubr.f32.gmra.mrb[0].mxu0 %v1729
  %v1797 = vpop.f32.mrb[0].mxu0
  %v1798 = vadd.f32 0.0, %v1797
  %v1799 = vpop.f32.mrb[0].mxu0
  %1800 = vdwg.mxu0
  %vm1801 = vcmask 48128
  %v1802 = vsel %vm1801, %v1725, 0.0
  %1803 = vadd.xlane.f32.xlu0 %v1802
  %v1804 = vpop.xlane.xlu0 %1803
  %v1805 = vsel %vm1801, %v1798, 0.0
  %1806 = vadd.xlane.f32.xlu0 %v1805
  %v1807 = vpop.xlane.xlu0 %1806
  %vm1808 = vcmp.gt.f32.partialorder %v1804, 0.0
  %vm1809 = vcmp.gt.f32.partialorder %v1807, 0.0
  %v1810 = vsel %vm1808, %v1804, 1.0
  %v1811 = vsel %vm1809, %v1807, 1.0
  %v1812 = vrcp.pop %v1810
  %v1813 = vmul.f32 %v1725, %v1812
  %v1814 = vrcp.pop %v1811
  %v1815 = vmul.f32 %v1798, %v1814
  %v1816 = vsel %vm1808, 1, 0
  %v1817 = vsel %vm1809, 1, 0
  %vm1818 = vcmp.eq.s32.totalorder %v1816, 1
  %vm1819 = vcmp.eq.s32.totalorder %v1817, 1
  %v1820 = vsel %vm1818, %v1813, 0.16666667
  %v1821 = vsel %vm1819, %v1815, 0.16666667
  %v1822 = vmul.f32 %v1820, 0.99999
  %v1823 = vmul.f32 %v1821, 0.99999
  %v1824 = vadd.f32 %v1822, 1.6666667e-06
  %v1825 = vadd.f32 %v1823, 1.6666667e-06
  %v1826 = vlog2.pop %v1824
  %v1827 = vmul.f32 %v1826, 0.6931472
  %v1828 = vlog2.pop %v1825
  %v1829 = vmul.f32 %v1828, 0.6931472
  %v1830 = vld [vmem:[%s11] sm:$0xff]
  %v1831 = vld [vmem:[%s11 + $0x8] sm:$0xff]
  %v1832 = vmul.f32 %v1830, 0.6
  %v1833 = vmul.f32 %v1831, 0.6
  %v1834 = vmul.f32 %v1824, 0.4
  %v1835 = vmul.f32 %v1825, 0.4
  %v1836 = vadd.f32 %v1832, %v1834
  %v1837 = vadd.f32 %v1833, %v1835
  %v1838 = vld [vmem:[%s12] sm:$0xff]
  %v1839 = vld [vmem:[%s12 + $0x8] sm:$0xff]
  %v1840 = vmul.f32 %v1838, 0.6
  %v1841 = vmul.f32 %v1839, 0.6
  %v1842 = vadd.f32 %v1840, %v1834
  %v1843 = vadd.f32 %v1841, %v1835
  %v1844 = vlog2.pop %v1836
  %v1845 = vmul.f32 %v1844, 0.6931472
  %v1846 = vlog2.pop %v1837
  %v1847 = vmul.f32 %v1846, 0.6931472
  %v1848 = vsub.f32 %v1827, %v1845
  %v1849 = vsub.f32 %v1829, %v1847
  %v1850 = vmul.f32 %v1824, %v1848
  %v1851 = vmul.f32 %v1825, %v1849
  %v1852 = vsel %vm1801, %v1850, 0.0
  %1853 = vadd.xlane.f32.xlu0 %v1852
  %v1854 = vpop.xlane.xlu0 %1853
  %v1855 = vsel %vm1801, %v1851, 0.0
  %1856 = vadd.xlane.f32.xlu0 %v1855
  %v1857 = vpop.xlane.xlu0 %1856
  %v1858 = vlog2.pop %v1842
  %v1859 = vmul.f32 %v1858, 0.6931472
  %v1860 = vlog2.pop %v1843
  %v1861 = vmul.f32 %v1860, 0.6931472
  %v1862 = vsub.f32 %v1827, %v1859
  %v1863 = vsub.f32 %v1829, %v1861
  %v1864 = vmul.f32 %v1824, %v1862
  %v1865 = vmul.f32 %v1825, %v1863
  %v1866 = vsel %vm1801, %v1864, 0.0
  %1867 = vadd.xlane.f32.xlu0 %v1866
  %v1868 = vpop.xlane.xlu0 %1867
  %v1869 = vsel %vm1801, %v1865, 0.0
  %1870 = vadd.xlane.f32.xlu0 %v1869
  %v1871 = vpop.xlane.xlu0 %1870
  %vm1872 = vcmask 7168
  %1873 = vst.msk [vmem:[%s13] sm:$0xff] %vm1872, %v1636
  %1874 = vst.msk [vmem:[%s13 + $0x8] sm:$0xff] %vm1872, %v1639
  %vm1875 = vcmask 15368
  %1876 = vst.msk [vmem:[%s13] sm:$0xff] %vm1875, %v1646
  %1877 = vst.msk [vmem:[%s13 + $0x8] sm:$0xff] %vm1875, %v1649
  %v1878 = vsub.f32 %v1636, %v1854
  %v1879 = vsub.f32 %v1639, %v1857
  %vm1880 = vcmask 23568
  %1881 = vst.msk [vmem:[%s13] sm:$0xff] %vm1880, %v1878
  %1882 = vst.msk [vmem:[%s13 + $0x8] sm:$0xff] %vm1880, %v1879
  %v1883 = vsub.f32 %v1646, %v1868
  %v1884 = vsub.f32 %v1649, %v1871
  %vm1885 = vcmask 31768
  %1886 = vst.msk [vmem:[%s13] sm:$0xff] %vm1885, %v1883
  %1887 = vst.msk [vmem:[%s13 + $0x8] sm:$0xff] %vm1885, %v1884
  // Predicated region
  $region54: #{tpu_custom_call.1} parent=0 // pred_check
    _
  $region55: #{tpu_custom_call.1} parent=0 // pred_check_branch
    %1889 = sbr.rel (0) target = $region57
  $region56: #{tpu_custom_call.1} parent=0 // pred_region
    _
  $region57: #{tpu_custom_call.1} parent=0 // pred_fallthru
    _
  // Predicated region
  $region58: #{tpu_custom_call.1} parent=0 // pred_check
    _
  $region59: #{tpu_custom_call.1} parent=0 // pred_check_branch
    %1891 = sbr.rel (0) target = $region61
  $region60: #{tpu_custom_call.1} parent=0 // pred_region
    _
  $region61: #{tpu_custom_call.1} parent=0 // pred_fallthru
    _

</llo_original>
